<compile_context>
chip_gen: v6e
topology: v6e:2x2x1
jax: 0.10.0
libtpu: 0.0.40
codegen_flags: <defaults>
</compile_context>

<pallas_src>
import math
import functools

import jax
import jax.numpy as jnp
from jax.experimental import pallas as pl
from jax.experimental.pallas import tpu as pltpu


def _attention_block_kernel(x_ref, gamma_ref, beta_ref, wqkv_ref, wproj_ref,
                            bproj_ref, o_ref, *, num_groups, num_heads, eps):
    C, HW = x_ref.shape
    G = num_groups
    gs = C // G
    nh = num_heads
    ch = C // nh

    x = x_ref[...]                                          # [C, HW] f32

    # ---- GroupNorm: big reductions on XLU (lane reduce), tiny group-agg matmuls ---
    s1 = jnp.sum(x, axis=-1, keepdims=True)                 # [C, 1]  sum x
    s2 = jnp.sum(x * x, axis=-1, keepdims=True)             # [C, 1]  sum x^2
    st = jnp.concatenate([s1, s2], axis=1)                  # [C, 2]
    g_ids = jax.lax.broadcasted_iota(jnp.int32, (G, C), 0)
    c_ids = jax.lax.broadcasted_iota(jnp.int32, (G, C), 1)
    A = jnp.logical_and(c_ids >= g_ids * gs,
                        c_ids < (g_ids + 1) * gs).astype(jnp.float32)   # [G, C]
    g_st = jnp.dot(A, st, preferred_element_type=jnp.float32) * (1.0 / (gs * HW))
    mean_g = g_st[:, 0:1]                                    # [G, 1]
    var_g = jnp.maximum(g_st[:, 1:2] - mean_g * mean_g, 0.0)
    inv_g = jax.lax.rsqrt(var_g + eps)
    gi = jnp.concatenate([mean_g, inv_g], axis=1)            # [G, 2]
    c_mi = jax.lax.dot_general(A, gi, (((0,), (0,)), ((), ())),
                               preferred_element_type=jnp.float32)      # [C, 2]
    a_c = gamma_ref[...] * c_mi[:, 1:2]                      # [C, 1]
    b_c = beta_ref[...] - c_mi[:, 0:1] * a_c                 # [C, 1]
    xn = (x * a_c + b_c).astype(jnp.bfloat16)                # [C, HW] bf16

    # ---- qkv 1x1 conv (bf16 MXU, f32 acc); attention scale pre-baked in weights ---
    qkv = jnp.dot(wqkv_ref[...], xn, preferred_element_type=jnp.float32)
    qkv = qkv.astype(jnp.bfloat16)                           # single bf16 [3C, HW]

    q = qkv[:C].reshape(nh, ch, HW)                          # [nh, ch, HW] bf16
    k = qkv[C:2 * C].reshape(nh, ch, HW)
    v = qkv[2 * C:].reshape(nh, ch, HW)

    # ---- attention: all heads batched in one pair of dot_generals --------------
    # TODO(synk): key-axis flash/online-softmax tiling for large HW (scores block
    # is [nh, HW, HW] and must fit VMEM; fine at DDPM attention resolutions).
    scores = jax.lax.dot_general(q, k, (((1,), (1,)), ((0,), (0,))),
                                 preferred_element_type=jnp.float32)    # [nh, T, S]
    m = jnp.max(scores, axis=-1, keepdims=True)                         # [nh, T, 1]
    p = jnp.exp(scores - m).astype(jnp.bfloat16)                        # [nh, T, S]

    # Row sums via a ones-row matmul -> already in [nh, 1, T] (lane) layout.
    ones_row = jnp.ones((nh, 1, HW), jnp.bfloat16)
    denom = jax.lax.dot_general(ones_row, p, (((2,), (2,)), ((0,), (0,))),
                                preferred_element_type=jnp.float32)     # [nh, 1, T]
    pv = jax.lax.dot_general(v, p, (((2,), (2,)), ((0,), (0,))),
                             preferred_element_type=jnp.float32)        # [nh, ch, T]
    # Normalize after the PV matmul (ch*HW work instead of HW^2).
    h_att = (pv * pl.reciprocal(denom, approx=True)).astype(jnp.bfloat16)
    h_att = h_att.reshape(C, HW)                                        # bf16

    # ---- proj 1x1 conv + bias + residual (reuse the already-loaded x) ----------
    proj = jnp.dot(wproj_ref[...], h_att, preferred_element_type=jnp.float32)
    o_ref[...] = (proj + bproj_ref[...] + x).astype(o_ref.dtype)


def _vmem_limit_bytes(C, HW, num_heads):
    """Generation-aware VMEM limit: request what we need, capped below capacity."""
    try:
        capacity = int(pltpu.get_tpu_info().vmem_capacity_bytes)
    except Exception:                       # pragma: no cover - conservative default
        capacity = 64 << 20                 # v7x per-TC capacity
    cap = (capacity * 3) // 4               # leave compiler headroom (48 MiB on v7x)
    est = (4 * C * HW * 4                   # x / out blocks, double-buffered
           + 2 * (3 * C * C + C * C) * 2    # bf16 weights (assume 2 buffers)
           + C * HW * (4 + 2 + 6 + 4 + 2 + 4)   # xn f32+bf16, qkv bf16, pv, h, proj
           + num_heads * HW * HW * (4 + 2))     # scores f32 + p bf16
    return int(min(cap, max(32 << 20, 2 * est)))


def attention_block(x, params, *, num_heads=1, num_groups=32, eps=1e-5):
    B, C, H, W = x.shape
    HW = H * W
    assert C % num_groups == 0 and C % num_heads == 0
    ch = C // num_heads

    # Natural layout: just flatten spatial (free reshape, no HBM transpose passes).
    x3 = x.reshape(B, C, HW).astype(jnp.float32)

    gamma = params["norm_w"].reshape(C, 1).astype(jnp.float32)
    beta = params["norm_b"].reshape(C, 1).astype(jnp.float32)

    # Permute qkv rows so q / k / v are contiguous [C, C] blocks (head-major within
    # each) and bake the attention scale into the q and k rows.
    w_qkv = params["qkv_w"].reshape(3 * C, C).astype(jnp.float32)
    perm = []
    for which in range(3):                        # 0=q, 1=k, 2=v
        for h in range(num_heads):
            base = h * 3 * ch + which * ch
            perm.extend(range(base, base + ch))
    w_qkv = w_qkv[jnp.asarray(perm, dtype=jnp.int32)]
    scale = 1.0 / math.sqrt(math.sqrt(ch))
    row_scale = jnp.concatenate([
        jnp.full((2 * C, 1), scale, jnp.float32),     # q and k rows
        jnp.ones((C, 1), jnp.float32),                # v rows
    ], axis=0)
    w_qkv = (w_qkv * row_scale).astype(jnp.bfloat16)

    w_proj = params["proj_w"].reshape(C, C).astype(jnp.bfloat16)
    b_proj = params["proj_b"].reshape(C, 1).astype(jnp.float32)

    kernel = functools.partial(_attention_block_kernel, num_groups=num_groups,
                               num_heads=num_heads, eps=eps)

    out = pl.pallas_call(
        kernel,
        out_shape=jax.ShapeDtypeStruct((B, C, HW), jnp.float32),
        grid=(B,),                                    # >= 2 steps -> v7x megacore can split
        in_specs=[
            pl.BlockSpec((None, C, HW), lambda i: (i, 0, 0)),   # x (one batch element)
            pl.BlockSpec((C, 1), lambda i: (0, 0)),             # norm gamma
            pl.BlockSpec((C, 1), lambda i: (0, 0)),             # norm beta
            pl.BlockSpec((3 * C, C), lambda i: (0, 0)),         # qkv weight (bf16, permuted+scaled)
            pl.BlockSpec((C, C), lambda i: (0, 0)),             # proj weight (bf16)
            pl.BlockSpec((C, 1), lambda i: (0, 0)),             # proj bias
        ],
        out_specs=pl.BlockSpec((None, C, HW), lambda i: (i, 0, 0)),
        compiler_params=pltpu.CompilerParams(
            dimension_semantics=("parallel",),
            vmem_limit_bytes=_vmem_limit_bytes(C, HW, num_heads)),
    )(x3, gamma, beta, w_qkv, w_proj, b_proj)

    return out.reshape(B, C, H, W)


def reference(x, params, *, num_heads=1, num_groups=32, eps=1e-5):
    """Plain-JAX reference mirroring the PyTorch forward exactly (f32)."""
    B, C, H, W = x.shape
    HW = H * W
    gamma, beta = params["norm_w"], params["norm_b"]
    w_qkv = params["qkv_w"].reshape(3 * C, C)
    w_proj = params["proj_w"].reshape(C, C)
    b_proj = params["proj_b"]

    xg = x.reshape(B, num_groups, C // num_groups, H, W)
    mean = xg.mean(axis=(2, 3, 4), keepdims=True)
    var = ((xg - mean) ** 2).mean(axis=(2, 3, 4), keepdims=True)
    xn = ((xg - mean) / jnp.sqrt(var + eps)).reshape(B, C, H, W)
    xn = xn * gamma[None, :, None, None] + beta[None, :, None, None]

    qkv = jnp.einsum("oc,bchw->bohw", w_qkv, xn).reshape(B * num_heads, -1, HW)
    ch = C // num_heads
    q, k, v = qkv[:, :ch], qkv[:, ch:2 * ch], qkv[:, 2 * ch:]
    scale = 1.0 / math.sqrt(math.sqrt(ch))
    attn = jnp.einsum("bct,bcs->bts", q * scale, k * scale)
    attn = jax.nn.softmax(attn, axis=-1)
    h = jnp.einsum("bts,bcs->bct", attn, v).reshape(B, C, H, W)
    h = jnp.einsum("oc,bchw->bohw", w_proj, h) + b_proj[None, :, None, None]
    return h + x


if __name__ == "__main__":
    B, C, H, W = 2, 64, 16, 16        # GroupNorm(32, C) requires C % 32 == 0; HW=256
    num_heads = 2                     # exercises the head-batched attention path

    key = jax.random.PRNGKey(0)
    k_x, k_g, k_b, k_qkv, k_pw, k_pb = jax.random.split(key, 6)

    x = jax.random.normal(k_x, (B, C, H, W), dtype=jnp.float32)
    params = {
        "norm_w": 1.0 + 0.1 * jax.random.normal(k_g, (C,), dtype=jnp.float32),
        "norm_b": 0.1 * jax.random.normal(k_b, (C,), dtype=jnp.float32),
        "qkv_w": 0.05 * jax.random.normal(k_qkv, (3 * C, C, 1, 1), dtype=jnp.float32),
        "proj_w": 0.05 * jax.random.normal(k_pw, (C, C, 1, 1), dtype=jnp.float32),
        "proj_b": 0.05 * jax.random.normal(k_pb, (C,), dtype=jnp.float32),
    }

    out = attention_block(x, params, num_heads=num_heads)
    out = jax.block_until_ready(out)

    ref = reference(x, params, num_heads=num_heads)
    assert out.shape == (B, C, H, W)
    # bf16 MXU operands (f32 accumulate) + approx reciprocal -> loosened tolerance.
    err = float(jnp.max(jnp.abs(out - ref)))
    assert err < 3e-2, err

    print("KERNEL_OK")
</pallas_src>

<mosaic_0001>
module attributes {stable_mosaic.version = 11 : i64} {
  func.func @_attention_block_kernel(%arg0: i32, %arg1: memref<1x64x256xf32, #tpu.memory_space<vmem>>, %arg2: memref<64x1xf32, #tpu.memory_space<vmem>>, %arg3: memref<64x1xf32, #tpu.memory_space<vmem>>, %arg4: memref<192x64xbf16, #tpu.memory_space<vmem>>, %arg5: memref<64x64xbf16, #tpu.memory_space<vmem>>, %arg6: memref<64x1xf32, #tpu.memory_space<vmem>>, %arg7: memref<1x64x256xf32, #tpu.memory_space<vmem>>) attributes {dimension_semantics = [#tpu.dimension_semantics<parallel>], iteration_bounds = array<i64: 2>, scalar_prefetch = 0 : i64, scratch_operands = 0 : i64, tpu.core_type = #tpu.core_type<tc>, window_params = [{transform_indices = @transform_0, window_bounds = array<i64: 1, 64, 256>}, {pipeline_mode = #tpu.pipeline_mode<synchronous>, transform_indices = @transform_1, window_bounds = array<i64: 64, 1>}, {pipeline_mode = #tpu.pipeline_mode<synchronous>, transform_indices = @transform_2, window_bounds = array<i64: 64, 1>}, {pipeline_mode = #tpu.pipeline_mode<synchronous>, transform_indices = @transform_3, window_bounds = array<i64: 192, 64>}, {pipeline_mode = #tpu.pipeline_mode<synchronous>, transform_indices = @transform_4, window_bounds = array<i64: 64, 64>}, {pipeline_mode = #tpu.pipeline_mode<synchronous>, transform_indices = @transform_5, window_bounds = array<i64: 64, 1>}, {transform_indices = @transform_6, window_bounds = array<i64: 1, 64, 256>}]} {
    %c0 = arith.constant 0 : index
    %c0_0 = arith.constant 0 : index
    %c0_1 = arith.constant 0 : index
    %0 = vector.load %arg1[%c0, %c0_0, %c0_1] : memref<1x64x256xf32, #tpu.memory_space<vmem>>, vector<1x64x256xf32>
    %1 = vector.shape_cast %0 : vector<1x64x256xf32> to vector<64x256xf32>
    %cst = arith.constant dense<0.000000e+00> : vector<64xf32>
    %2 = vector.multi_reduction <add>, %1, %cst [1] : vector<64x256xf32> to vector<64xf32>
    %3 = vector.shape_cast %2 : vector<64xf32> to vector<64x1xf32>
    %4 = arith.mulf %1, %1 : vector<64x256xf32>
    %cst_2 = arith.constant dense<0.000000e+00> : vector<64xf32>
    %5 = vector.multi_reduction <add>, %4, %cst_2 [1] : vector<64x256xf32> to vector<64xf32>
    %6 = vector.shape_cast %5 : vector<64xf32> to vector<64x1xf32>
    %7 = tpu.concatenate %3, %6 in 1 : vector<64x1xf32>, vector<64x1xf32> -> vector<64x2xf32>
    %8 = tpu.iota {dimensions = array<i32: 0>} : vector<32x64xi32>
    %9 = tpu.iota {dimensions = array<i32: 1>} : vector<32x64xi32>
    %c2_i32 = arith.constant 2 : i32
    %10 = vector.broadcast %c2_i32 : i32 to vector<32x64xi32>
    %11 = arith.muli %8, %10 : vector<32x64xi32>
    %12 = arith.cmpi sge, %9, %11 : vector<32x64xi32>
    %c1_i32 = arith.constant 1 : i32
    %13 = vector.broadcast %c1_i32 : i32 to vector<32x64xi32>
    %14 = arith.addi %8, %13 : vector<32x64xi32>
    %c2_i32_3 = arith.constant 2 : i32
    %15 = vector.broadcast %c2_i32_3 : i32 to vector<32x64xi32>
    %16 = arith.muli %14, %15 : vector<32x64xi32>
    %17 = arith.cmpi slt, %9, %16 : vector<32x64xi32>
    %18 = arith.andi %12, %17 : vector<32x64xi1>
    %19 = arith.extui %18 : vector<32x64xi1> to vector<32x64xi32>
    %20 = arith.sitofp %19 : vector<32x64xi32> to vector<32x64xf32>
    %cst_4 = arith.constant dense<0.000000e+00> : vector<32x2xf32>
    %21 = tpu.matmul %20, %7, %cst_4 {dimension_numbers = #tpu.dot_dimension_numbers<[1], [0], [0], [1], [0, 0, 1, 1], [], []>} : vector<32x64xf32>, vector<64x2xf32>, vector<32x2xf32> -> vector<32x2xf32>
    %cst_5 = arith.constant 0.001953125 : f32
    %22 = vector.broadcast %cst_5 : f32 to vector<32x2xf32>
    %23 = arith.mulf %21, %22 : vector<32x2xf32>
    %24 = vector.extract_strided_slice %23 {offsets = [0, 0], sizes = [32, 1], strides = [1, 1]} : vector<32x2xf32> to vector<32x1xf32>
    %25 = vector.extract_strided_slice %23 {offsets = [0, 1], sizes = [32, 1], strides = [1, 1]} : vector<32x2xf32> to vector<32x1xf32>
    %26 = arith.mulf %24, %24 : vector<32x1xf32>
    %27 = arith.subf %25, %26 : vector<32x1xf32>
    %cst_6 = arith.constant 0.000000e+00 : f32
    %28 = vector.broadcast %cst_6 : f32 to vector<32x1xf32>
    %29 = arith.maximumf %27, %28 : vector<32x1xf32>
    %cst_7 = arith.constant 9.99999974E-6 : f32
    %30 = vector.broadcast %cst_7 : f32 to vector<32x1xf32>
    %31 = arith.addf %29, %30 : vector<32x1xf32>
    %32 = math.rsqrt %31 : vector<32x1xf32>
    %33 = tpu.concatenate %24, %32 in 1 : vector<32x1xf32>, vector<32x1xf32> -> vector<32x2xf32>
    %cst_8 = arith.constant dense<0.000000e+00> : vector<64x2xf32>
    %34 = tpu.matmul %20, %33, %cst_8 {dimension_numbers = #tpu.dot_dimension_numbers<[0], [0], [1], [1], [0, 1, 1, 1], [], []>} : vector<32x64xf32>, vector<32x2xf32>, vector<64x2xf32> -> vector<64x2xf32>
    %c0_9 = arith.constant 0 : index
    %c0_10 = arith.constant 0 : index
    %35 = vector.load %arg2[%c0_9, %c0_10] : memref<64x1xf32, #tpu.memory_space<vmem>>, vector<64x1xf32>
    %36 = vector.extract_strided_slice %34 {offsets = [0, 1], sizes = [64, 1], strides = [1, 1]} : vector<64x2xf32> to vector<64x1xf32>
    %37 = arith.mulf %35, %36 : vector<64x1xf32>
    %c0_11 = arith.constant 0 : index
    %c0_12 = arith.constant 0 : index
    %38 = vector.load %arg3[%c0_11, %c0_12] : memref<64x1xf32, #tpu.memory_space<vmem>>, vector<64x1xf32>
    %39 = vector.extract_strided_slice %34 {offsets = [0, 0], sizes = [64, 1], strides = [1, 1]} : vector<64x2xf32> to vector<64x1xf32>
    %40 = arith.mulf %39, %37 : vector<64x1xf32>
    %41 = arith.subf %38, %40 : vector<64x1xf32>
    %42 = vector.broadcast %37 : vector<64x1xf32> to vector<64x256xf32>
    %43 = arith.mulf %1, %42 : vector<64x256xf32>
    %44 = vector.broadcast %41 : vector<64x1xf32> to vector<64x256xf32>
    %45 = arith.addf %43, %44 : vector<64x256xf32>
    %46 = arith.truncf %45 : vector<64x256xf32> to vector<64x256xbf16>
    %c0_13 = arith.constant 0 : index
    %c0_14 = arith.constant 0 : index
    %47 = vector.load %arg4[%c0_13, %c0_14] : memref<192x64xbf16, #tpu.memory_space<vmem>>, vector<192x64xbf16>
    %cst_15 = arith.constant dense<0.000000e+00> : vector<192x256xf32>
    %48 = tpu.matmul %47, %46, %cst_15 {dimension_numbers = #tpu.dot_dimension_numbers<[1], [0], [0], [1], [0, 0, 1, 1], [], []>} : vector<192x64xbf16>, vector<64x256xbf16>, vector<192x256xf32> -> vector<192x256xf32>
    %49 = arith.truncf %48 : vector<192x256xf32> to vector<192x256xbf16>
    %50 = vector.extract_strided_slice %49 {offsets = [0, 0], sizes = [64, 256], strides = [1, 1]} : vector<192x256xbf16> to vector<64x256xbf16>
    %51 = vector.shape_cast %50 : vector<64x256xbf16> to vector<2x32x256xbf16>
    %52 = vector.extract_strided_slice %49 {offsets = [64, 0], sizes = [64, 256], strides = [1, 1]} : vector<192x256xbf16> to vector<64x256xbf16>
    %53 = vector.shape_cast %52 : vector<64x256xbf16> to vector<2x32x256xbf16>
    %54 = vector.extract_strided_slice %49 {offsets = [128, 0], sizes = [64, 256], strides = [1, 1]} : vector<192x256xbf16> to vector<64x256xbf16>
    %55 = vector.shape_cast %54 : vector<64x256xbf16> to vector<2x32x256xbf16>
    %cst_16 = arith.constant dense<0.000000e+00> : vector<2x256x256xf32>
    %56 = tpu.matmul %51, %53, %cst_16 {dimension_numbers = #tpu.dot_dimension_numbers<[1], [1], [2], [2], [0, 0, 0, 2, 1, 2], [0], [0]>} : vector<2x32x256xbf16>, vector<2x32x256xbf16>, vector<2x256x256xf32> -> vector<2x256x256xf32>
    %cst_17 = arith.constant dense<0xFF800000> : vector<2x256xf32>
    %57 = vector.multi_reduction <maximumf>, %56, %cst_17 [2] : vector<2x256x256xf32> to vector<2x256xf32>
    %58 = vector.shape_cast %57 : vector<2x256xf32> to vector<2x256x1xf32>
    %59 = vector.broadcast %58 : vector<2x256x1xf32> to vector<2x256x256xf32>
    %60 = arith.subf %56, %59 : vector<2x256x256xf32>
    %61 = math.exp %60 : vector<2x256x256xf32>
    %62 = arith.truncf %61 : vector<2x256x256xf32> to vector<2x256x256xbf16>
    %cst_18 = arith.constant 1.000000e+00 : bf16
    %63 = vector.broadcast %cst_18 : bf16 to vector<2x1x256xbf16>
    %cst_19 = arith.constant dense<0.000000e+00> : vector<2x1x256xf32>
    %64 = tpu.matmul %63, %62, %cst_19 {dimension_numbers = #tpu.dot_dimension_numbers<[2], [2], [1], [1], [0, 0, 0, 1, 1, 1], [0], [0]>} : vector<2x1x256xbf16>, vector<2x256x256xbf16>, vector<2x1x256xf32> -> vector<2x1x256xf32>
    %cst_20 = arith.constant dense<0.000000e+00> : vector<2x32x256xf32>
    %65 = tpu.matmul %55, %62, %cst_20 {dimension_numbers = #tpu.dot_dimension_numbers<[2], [2], [1], [1], [0, 0, 0, 1, 1, 1], [0], [0]>} : vector<2x32x256xbf16>, vector<2x256x256xbf16>, vector<2x32x256xf32> -> vector<2x32x256xf32>
    %66 = tpu.reciprocal %64 {approx = true} : vector<2x1x256xf32> -> vector<2x1x256xf32>
    %67 = vector.broadcast %66 : vector<2x1x256xf32> to vector<2x32x256xf32>
    %68 = arith.mulf %65, %67 : vector<2x32x256xf32>
    %69 = arith.truncf %68 : vector<2x32x256xf32> to vector<2x32x256xbf16>
    %70 = vector.shape_cast %69 : vector<2x32x256xbf16> to vector<64x256xbf16>
    %c0_21 = arith.constant 0 : index
    %c0_22 = arith.constant 0 : index
    %71 = vector.load %arg5[%c0_21, %c0_22] : memref<64x64xbf16, #tpu.memory_space<vmem>>, vector<64x64xbf16>
    %cst_23 = arith.constant dense<0.000000e+00> : vector<64x256xf32>
    %72 = tpu.matmul %71, %70, %cst_23 {dimension_numbers = #tpu.dot_dimension_numbers<[1], [0], [0], [1], [0, 0, 1, 1], [], []>} : vector<64x64xbf16>, vector<64x256xbf16>, vector<64x256xf32> -> vector<64x256xf32>
    %c0_24 = arith.constant 0 : index
    %c0_25 = arith.constant 0 : index
    %73 = vector.load %arg6[%c0_24, %c0_25] : memref<64x1xf32, #tpu.memory_space<vmem>>, vector<64x1xf32>
    %74 = vector.broadcast %73 : vector<64x1xf32> to vector<64x256xf32>
    %75 = arith.addf %72, %74 : vector<64x256xf32>
    %76 = arith.addf %75, %1 : vector<64x256xf32>
    %c0_26 = arith.constant 0 : index
    %c0_27 = arith.constant 0 : index
    %c0_28 = arith.constant 0 : index
    %77 = vector.load %arg7[%c0_26, %c0_27, %c0_28] : memref<1x64x256xf32, #tpu.memory_space<vmem>>, vector<1x64x256xf32>
    %78 = vector.shape_cast %77 : vector<1x64x256xf32> to vector<64x256xf32>
    %79 = vector.shape_cast %76 : vector<64x256xf32> to vector<1x64x256xf32>
    tpu.vector_store %arg7[%c0_26, %c0_27, %c0_28], %79 {strides = array<i32>} : memref<1x64x256xf32, #tpu.memory_space<vmem>>, vector<1x64x256xf32>,
    return
  }
  func.func @transform_0(%arg0: i32) -> (i32, i32, i32) {
    %c0_i32 = arith.constant 0 : i32
    %c0_i32_0 = arith.constant 0 : i32
    %c0_i32_1 = arith.constant 0 : i32
    return %arg0, %c0_i32, %c0_i32_0 : i32, i32, i32
  }
  func.func @transform_1(%arg0: i32) -> (i32, i32) {
    %c0_i32 = arith.constant 0 : i32
    %c0_i32_0 = arith.constant 0 : i32
    %c0_i32_1 = arith.constant 0 : i32
    return %c0_i32, %c0_i32_0 : i32, i32
  }
  func.func @transform_2(%arg0: i32) -> (i32, i32) {
    %c0_i32 = arith.constant 0 : i32
    %c0_i32_0 = arith.constant 0 : i32
    %c0_i32_1 = arith.constant 0 : i32
    return %c0_i32, %c0_i32_0 : i32, i32
  }
  func.func @transform_3(%arg0: i32) -> (i32, i32) {
    %c0_i32 = arith.constant 0 : i32
    %c0_i32_0 = arith.constant 0 : i32
    %c0_i32_1 = arith.constant 0 : i32
    return %c0_i32, %c0_i32_0 : i32, i32
  }
  func.func @transform_4(%arg0: i32) -> (i32, i32) {
    %c0_i32 = arith.constant 0 : i32
    %c0_i32_0 = arith.constant 0 : i32
    %c0_i32_1 = arith.constant 0 : i32
    return %c0_i32, %c0_i32_0 : i32, i32
  }
  func.func @transform_5(%arg0: i32) -> (i32, i32) {
    %c0_i32 = arith.constant 0 : i32
    %c0_i32_0 = arith.constant 0 : i32
    %c0_i32_1 = arith.constant 0 : i32
    return %c0_i32, %c0_i32_0 : i32, i32
  }
  func.func @transform_6(%arg0: i32) -> (i32, i32, i32) {
    %c0_i32 = arith.constant 0 : i32
    %c0_i32_0 = arith.constant 0 : i32
    %c0_i32_1 = arith.constant 0 : i32
    return %arg0, %c0_i32, %c0_i32_0 : i32, i32, i32
  }
}

</mosaic_0001>

<llo_original>
// kernel: tpu_custom_call.1
$region0: #{tpu_custom_call.1}
  #allocation0 [shape = 'u32[]', space=smem, size = 0x4, offset = 0x4, fixed_abs, tag = 'smem constant byte address 0x4 - core index']
  #allocation1 [shape = 'u32[144,128]{1,0:T(1,128)}', space=vmem, size = 0x12000, scoped, tag = 'internal scratch']
  %s0 = inlined_call_operand.vmem [shape: f32[2,64,256], index: 0, kind: input, shape index: {}]
  %s1 = inlined_call_operand.vmem [shape: f32[64,1], index: 1, kind: input, shape index: {}]
  %s2 = inlined_call_operand.vmem [shape: f32[64,1], index: 2, kind: input, shape index: {}]
  %s3 = inlined_call_operand.vmem [shape: bf16[192,64], index: 3, kind: input, shape index: {}]
  %s4 = inlined_call_operand.vmem [shape: bf16[64,64], index: 4, kind: input, shape index: {}]
  %s5 = inlined_call_operand.vmem [shape: f32[64,1], index: 5, kind: input, shape index: {}]
  %s6 = inlined_call_operand.hbm [shape: f32[2,64,256], index: 6, kind: output, shape index: {}]
  %s7 = sld [smem:[#allocation0]]
  $region57: #{tpu_custom_call.1} parent=0
    _
  %s9 = ssub.s32 1, %s7
  %s10 = scalar_select 0, %s9, %s7
  $region1: #{tpu_custom_call.1} parent=0
    #allocation2 [shape = 'u8[131072]{0}', space=vmem, size = 0x20000, scoped, tag = 'output window, operand 0']
    #allocation3 [shape = 's32[2]{0}', space=sflag, size = 0x8, scoped, tag = 'scoped memory for tpu_custom_call.1']
    %11 = vsyncpa [#allocation3], 0
    %s12 = scalar_lea.sflag [#allocation3], 1
    %13 = vsyncpa %s12, 0
    loop: start=0, step=1, limit=4
    $region2: #{tpu_custom_call.1} parent=1 // loop_pre_header
      _
    $region3: #{tpu_custom_call.1} parent=1 // loop_header
      %s15 = sphi 0, %s19
      %p16 = scmp.ge.s32.totalorder %s15, 4
      %s25 = sphi 0, %s27
      %s28 = sphi 0, %s25
      %s29 = sphi 0, %s28
      %s45 = sphi 0, %s29
      %s49 = sphi 0, %s49
      %s51 = sphi 0, %s49
      %s52 = sphi 0, %s51
      %s66 = sphi 0, %s52
      %s70 = sphi 0, %s70
      %s72 = sphi 0, %s70
      %s73 = sphi 0, %s72
      %s87 = sphi 0, %s73
      %s91 = sphi 0, %s91
      %s93 = sphi 0, %s91
      %s94 = sphi 0, %s93
      %s108 = sphi 0, %s94
      %s112 = sphi 0, %s112
      %s114 = sphi 0, %s112
      %s115 = sphi 0, %s114
      %s129 = sphi 0, %s115
      %s133 = sphi 0, %s133
      %s135 = sphi 0, %s133
      %s136 = sphi 0, %s135
      %s150 = sphi 0, %s136
      %s156 = sphi 0, %s158
      %s159 = sphi 0, %s156
      %s160 = sphi 0, %s159
      %s176 = sphi 0, %s160
    $region4: #{tpu_custom_call.1} parent=1 // loop_header_branch
      %18 = sbr.rel (%p16) target = $region8
    $region5: #{tpu_custom_call.1} parent=1 // loop_body
      %s20 = ssub.s32 %s15, 1
      %s21 = ssub.s32 %s15, 2
      %s22 = sadd.s32 %s15, 1
      %s23 = ssub.s32 %s15, %s22
      %p24 = scmp.eq.s32.totalorder %s23, 0
      %s26 = sadd.s32 %s25, 1
      %s27 = scalar_select %p24, %s25, %s26
      %p30 = pneg %p24
      %p31 = scmp.eq.s32.totalorder %s15, 1
      %p32 = por %p30, %p31
      %p33 = scmp.ne.s32.totalorder %s25, %s28
      %p34 = scmp.eq.s32.totalorder %s15, 0
      %p35 = por %p33, %p34
      %p36 = scmp.ne.s32.totalorder %s25, %s28
      %p37 = scmp.eq.s32.totalorder %s20, 1
      %p38 = por %p36, %p37
      %p39 = scmp.ne.s32.totalorder %s28, %s29
      %p40 = scmp.eq.s32.totalorder %s20, 0
      %p41 = por %p39, %p40
      %p42 = scmp.ne.s32.totalorder %s28, %s29
      %p43 = scmp.eq.s32.totalorder %s21, 1
      %p44 = por %p42, %p43
      %p46 = scmp.ne.s32.totalorder %s29, %s45
      %p47 = scmp.eq.s32.totalorder %s21, 0
      %p48 = por %p46, %p47
      %s50 = sadd.s32 %s49, 1
      %p53 = scmp.eq.s32.totalorder %s15, 1
      %p54 = scmp.ne.s32.totalorder %s49, %s51
      %p55 = scmp.eq.s32.totalorder %s15, 0
      %p56 = por %p54, %p55
      %p57 = scmp.ne.s32.totalorder %s49, %s51
      %p58 = scmp.eq.s32.totalorder %s20, 1
      %p59 = por %p57, %p58
      %p60 = scmp.ne.s32.totalorder %s51, %s52
      %p61 = scmp.eq.s32.totalorder %s20, 0
      %p62 = por %p60, %p61
      %p63 = scmp.ne.s32.totalorder %s51, %s52
      %p64 = scmp.eq.s32.totalorder %s21, 1
      %p65 = por %p63, %p64
      %p67 = scmp.ne.s32.totalorder %s52, %s66
      %p68 = scmp.eq.s32.totalorder %s21, 0
      %p69 = por %p67, %p68
      %s71 = sadd.s32 %s70, 1
      %p74 = scmp.eq.s32.totalorder %s15, 1
      %p75 = scmp.ne.s32.totalorder %s70, %s72
      %p76 = scmp.eq.s32.totalorder %s15, 0
      %p77 = por %p75, %p76
      %p78 = scmp.ne.s32.totalorder %s70, %s72
      %p79 = scmp.eq.s32.totalorder %s20, 1
      %p80 = por %p78, %p79
      %p81 = scmp.ne.s32.totalorder %s72, %s73
      %p82 = scmp.eq.s32.totalorder %s20, 0
      %p83 = por %p81, %p82
      %p84 = scmp.ne.s32.totalorder %s72, %s73
      %p85 = scmp.eq.s32.totalorder %s21, 1
      %p86 = por %p84, %p85
      %p88 = scmp.ne.s32.totalorder %s73, %s87
      %p89 = scmp.eq.s32.totalorder %s21, 0
      %p90 = por %p88, %p89
      %s92 = sadd.s32 %s91, 1
      %p95 = scmp.eq.s32.totalorder %s15, 1
      %p96 = scmp.ne.s32.totalorder %s91, %s93
      %p97 = scmp.eq.s32.totalorder %s15, 0
      %p98 = por %p96, %p97
      %p99 = scmp.ne.s32.totalorder %s91, %s93
      %p100 = scmp.eq.s32.totalorder %s20, 1
      %p101 = por %p99, %p100
      %p102 = scmp.ne.s32.totalorder %s93, %s94
      %p103 = scmp.eq.s32.totalorder %s20, 0
      %p104 = por %p102, %p103
      %p105 = scmp.ne.s32.totalorder %s93, %s94
      %p106 = scmp.eq.s32.totalorder %s21, 1
      %p107 = por %p105, %p106
      %p109 = scmp.ne.s32.totalorder %s94, %s108
      %p110 = scmp.eq.s32.totalorder %s21, 0
      %p111 = por %p109, %p110
      %s113 = sadd.s32 %s112, 1
      %p116 = scmp.eq.s32.totalorder %s15, 1
      %p117 = scmp.ne.s32.totalorder %s112, %s114
      %p118 = scmp.eq.s32.totalorder %s15, 0
      %p119 = por %p117, %p118
      %p120 = scmp.ne.s32.totalorder %s112, %s114
      %p121 = scmp.eq.s32.totalorder %s20, 1
      %p122 = por %p120, %p121
      %p123 = scmp.ne.s32.totalorder %s114, %s115
      %p124 = scmp.eq.s32.totalorder %s20, 0
      %p125 = por %p123, %p124
      %p126 = scmp.ne.s32.totalorder %s114, %s115
      %p127 = scmp.eq.s32.totalorder %s21, 1
      %p128 = por %p126, %p127
      %p130 = scmp.ne.s32.totalorder %s115, %s129
      %p131 = scmp.eq.s32.totalorder %s21, 0
      %p132 = por %p130, %p131
      %s134 = sadd.s32 %s133, 1
      %p137 = scmp.eq.s32.totalorder %s15, 1
      %p138 = scmp.ne.s32.totalorder %s133, %s135
      %p139 = scmp.eq.s32.totalorder %s15, 0
      %p140 = por %p138, %p139
      %p141 = scmp.ne.s32.totalorder %s133, %s135
      %p142 = scmp.eq.s32.totalorder %s20, 1
      %p143 = por %p141, %p142
      %p144 = scmp.ne.s32.totalorder %s135, %s136
      %p145 = scmp.eq.s32.totalorder %s20, 0
      %p146 = por %p144, %p145
      %p147 = scmp.ne.s32.totalorder %s135, %s136
      %p148 = scmp.eq.s32.totalorder %s21, 1
      %p149 = por %p147, %p148
      %p151 = scmp.ne.s32.totalorder %s136, %s150
      %p152 = scmp.eq.s32.totalorder %s21, 0
      %p153 = por %p151, %p152
      %s154 = ssub.s32 %s15, %s22
      %p155 = scmp.eq.s32.totalorder %s154, 0
      %s157 = sadd.s32 %s156, 1
      %s158 = scalar_select %p155, %s156, %s157
      %p161 = pneg %p155
      %p162 = scmp.eq.s32.totalorder %s15, 1
      %p163 = por %p161, %p162
      %p164 = scmp.ne.s32.totalorder %s156, %s159
      %p165 = scmp.eq.s32.totalorder %s15, 0
      %p166 = por %p164, %p165
      %p167 = scmp.ne.s32.totalorder %s156, %s159
      %p168 = scmp.eq.s32.totalorder %s20, 1
      %p169 = por %p167, %p168
      %p170 = scmp.ne.s32.totalorder %s159, %s160
      %p171 = scmp.eq.s32.totalorder %s20, 0
      %p172 = por %p170, %p171
      %p173 = scmp.ne.s32.totalorder %s159, %s160
      %p174 = scmp.eq.s32.totalorder %s21, 1
      %p175 = por %p173, %p174
      %p177 = scmp.ne.s32.totalorder %s160, %s176
      %p178 = scmp.eq.s32.totalorder %s21, 0
      %p179 = por %p177, %p178
      %p180 = scmp.le.s32.totalorder 1, %s15
      %p181 = scmp.lt.s32.totalorder %s15, 3
      %p182 = pnand %p180, %p181
      %p183 = pneg %p182
      // Predicated region
      $region9: #{tpu_custom_call.1} parent=5 // pred_check
        _
      $region10: #{tpu_custom_call.1} parent=5 // pred_check_branch
        %185 = sbr.rel (%p182) target = $region12
      $region11: #{tpu_custom_call.1} parent=5 // pred_region
        %s186 = ssub.s32 %s15, 1
        // Predicated region
        $region13: #{tpu_custom_call.1} parent=11 // pred_check
          %p187 = pneg %p62
        $region14: #{tpu_custom_call.1} parent=11 // pred_check_branch
          %189 = sbr.rel (%p187) target = $region16
        $region15: #{tpu_custom_call.1} parent=11 // pred_region
          _
        $region16: #{tpu_custom_call.1} parent=11 // pred_fallthru
          _
        // Predicated region
        $region17: #{tpu_custom_call.1} parent=11 // pred_check
          %p190 = pneg %p83
        $region18: #{tpu_custom_call.1} parent=11 // pred_check_branch
          %192 = sbr.rel (%p190) target = $region20
        $region19: #{tpu_custom_call.1} parent=11 // pred_region
          _
        $region20: #{tpu_custom_call.1} parent=11 // pred_fallthru
          _
        // Predicated region
        $region21: #{tpu_custom_call.1} parent=11 // pred_check
          %p193 = pneg %p104
        $region22: #{tpu_custom_call.1} parent=11 // pred_check_branch
          %195 = sbr.rel (%p193) target = $region24
        $region23: #{tpu_custom_call.1} parent=11 // pred_region
          _
        $region24: #{tpu_custom_call.1} parent=11 // pred_fallthru
          _
        // Predicated region
        $region25: #{tpu_custom_call.1} parent=11 // pred_check
          %p196 = pneg %p125
        $region26: #{tpu_custom_call.1} parent=11 // pred_check_branch
          %198 = sbr.rel (%p196) target = $region28
        $region27: #{tpu_custom_call.1} parent=11 // pred_region
          _
        $region28: #{tpu_custom_call.1} parent=11 // pred_fallthru
          _
        // Predicated region
        $region29: #{tpu_custom_call.1} parent=11 // pred_check
          %p199 = pneg %p146
        $region30: #{tpu_custom_call.1} parent=11 // pred_check_branch
          %201 = sbr.rel (%p199) target = $region32
        $region31: #{tpu_custom_call.1} parent=11 // pred_region
          _
        $region32: #{tpu_custom_call.1} parent=11 // pred_fallthru
          _
      $region12: #{tpu_custom_call.1} parent=5 // pred_fallthru
        _
      %p202 = scmp.lt.s32.totalorder %s15, 2
      // Predicated region
      $region33: #{tpu_custom_call.1} parent=5 // pred_check
        %p203 = pneg %p202
      $region34: #{tpu_custom_call.1} parent=5 // pred_check_branch
        %205 = sbr.rel (%p203) target = $region36
      $region35: #{tpu_custom_call.1} parent=5 // pred_region
        // Predicated region
        $region37: #{tpu_custom_call.1} parent=35 // pred_check
          %p206 = pneg %p35
        $region38: #{tpu_custom_call.1} parent=35 // pred_check_branch
          %208 = sbr.rel (%p206) target = $region40
        $region39: #{tpu_custom_call.1} parent=35 // pred_region
          %p209 = scmp.lt.s32.totalorder %s15, 1
          %s210 = scalar_select %p209, %s15, 1
          %s211 = smul.addr %s210, 16
          %s212 = smul.addr %s211, 8
          %s213 = scalar_lea.vmem %s0, %s212
        $region40: #{tpu_custom_call.1} parent=35 // pred_fallthru
          _
      $region36: #{tpu_custom_call.1} parent=5 // pred_fallthru
        _
      %p214 = scmp.le.s32.totalorder 1, %s15
      %p215 = scmp.lt.s32.totalorder %s15, 3
      %p216 = pnand %p214, %p215
      %p217 = pneg %p216
      // Predicated region
      $region41: #{tpu_custom_call.1} parent=5 // pred_check
        _
      $region42: #{tpu_custom_call.1} parent=5 // pred_check_branch
        %219 = sbr.rel (%p216) target = $region44
      $region43: #{tpu_custom_call.1} parent=5 // pred_region
        %s220 = ssub.s32 %s15, 1
        %p221 = scmp.lt.s32.totalorder %s20, 1
        %s222 = scalar_select %p221, %s20, 1
        %s223 = smul.addr %s222, 16
        %s224 = smul.addr %s223, 8
        %s225 = scalar_lea.vmem %s0, %s224
        %p226 = pneg %p41
        %p227 = pneg %p38
        %p228 = pneg %p62
        %p229 = pneg %p59
        %p230 = pneg %p83
        %p231 = pneg %p80
        %p232 = pneg %p104
        %p233 = pneg %p101
        %p234 = pneg %p125
        %p235 = pneg %p122
        %p236 = pneg %p146
        %p237 = pneg %p143
        %p238 = pneg %p172
        %p239 = pneg %p169
        %s240 = sand.u32 %s159, 1
        %s241 = scalar_lea.sflag [#allocation3], %s240
        %s242 = sand.u32 %s159, 1
        %s243 = smul.addr %s242, 128
        %s244 = scalar_lea.vmem [#allocation2], %s243
        %p245 = scmp.lt.s32.totalorder %s20, 1
        %s246 = scalar_select %p245, %s20, 1
        %s247 = smul.addr %s246, 16
        %s248 = smul.addr %s247, 8
        %s249 = scalar_lea.vmem %s0, %s248
        %v252 = vld [vmem:[%s249] sm:$0xff]
        %v253 = vld [vmem:[%s249 + $0x8] sm:$0xff]
        %v254 = vld [vmem:[%s249 + $0x10] sm:$0xff]
        %v255 = vld [vmem:[%s249 + $0x18] sm:$0xff]
        %v256 = vld [vmem:[%s249 + $0x20] sm:$0xff]
        %v257 = vld [vmem:[%s249 + $0x28] sm:$0xff]
        %v258 = vld [vmem:[%s249 + $0x30] sm:$0xff]
        %v259 = vld [vmem:[%s249 + $0x38] sm:$0xff]
        %v260 = vld [vmem:[%s249 + $0x40] sm:$0xff]
        %v261 = vld [vmem:[%s249 + $0x48] sm:$0xff]
        %v262 = vld [vmem:[%s249 + $0x50] sm:$0xff]
        %v263 = vld [vmem:[%s249 + $0x58] sm:$0xff]
        %v264 = vld [vmem:[%s249 + $0x60] sm:$0xff]
        %v265 = vld [vmem:[%s249 + $0x68] sm:$0xff]
        %v266 = vld [vmem:[%s249 + $0x70] sm:$0xff]
        %v267 = vld [vmem:[%s249 + $0x78] sm:$0xff]
        %v268 = vadd.f32 %v252, %v253
        %269 = vadd.xlane.f32.xlu0 %v268
        %v270 = vpop.xlane.xlu0 %269
        %v271 = vadd.f32 %v254, %v255
        %272 = vadd.xlane.f32.xlu0 %v271
        %v273 = vpop.xlane.xlu0 %272
        %v274 = vadd.f32 %v256, %v257
        %275 = vadd.xlane.f32.xlu0 %v274
        %v276 = vpop.xlane.xlu0 %275
        %v277 = vadd.f32 %v258, %v259
        %278 = vadd.xlane.f32.xlu0 %v277
        %v279 = vpop.xlane.xlu0 %278
        %v280 = vadd.f32 %v260, %v261
        %281 = vadd.xlane.f32.xlu0 %v280
        %v282 = vpop.xlane.xlu0 %281
        %v283 = vadd.f32 %v262, %v263
        %284 = vadd.xlane.f32.xlu0 %v283
        %v285 = vpop.xlane.xlu0 %284
        %v286 = vadd.f32 %v264, %v265
        %287 = vadd.xlane.f32.xlu0 %v286
        %v288 = vpop.xlane.xlu0 %287
        %v289 = vadd.f32 %v266, %v267
        %290 = vadd.xlane.f32.xlu0 %v289
        %v291 = vpop.xlane.xlu0 %290
        %v292 = vmul.f32 %v252, %v252
        %v293 = vmul.f32 %v253, %v253
        %v294 = vmul.f32 %v254, %v254
        %v295 = vmul.f32 %v255, %v255
        %v296 = vmul.f32 %v256, %v256
        %v297 = vmul.f32 %v257, %v257
        %v298 = vmul.f32 %v258, %v258
        %v299 = vmul.f32 %v259, %v259
        %v300 = vmul.f32 %v260, %v260
        %v301 = vmul.f32 %v261, %v261
        %v302 = vmul.f32 %v262, %v262
        %v303 = vmul.f32 %v263, %v263
        %v304 = vmul.f32 %v264, %v264
        %v305 = vmul.f32 %v265, %v265
        %v306 = vmul.f32 %v266, %v266
        %v307 = vmul.f32 %v267, %v267
        %v308 = vadd.f32 %v292, %v293
        %309 = vadd.xlane.f32.xlu0 %v308
        %v310 = vpop.xlane.xlu0 %309
        %v311 = vadd.f32 %v294, %v295
        %312 = vadd.xlane.f32.xlu0 %v311
        %v313 = vpop.xlane.xlu0 %312
        %v314 = vadd.f32 %v296, %v297
        %315 = vadd.xlane.f32.xlu0 %v314
        %v316 = vpop.xlane.xlu0 %315
        %v317 = vadd.f32 %v298, %v299
        %318 = vadd.xlane.f32.xlu0 %v317
        %v319 = vpop.xlane.xlu0 %318
        %v320 = vadd.f32 %v300, %v301
        %321 = vadd.xlane.f32.xlu0 %v320
        %v322 = vpop.xlane.xlu0 %321
        %v323 = vadd.f32 %v302, %v303
        %324 = vadd.xlane.f32.xlu0 %v323
        %v325 = vpop.xlane.xlu0 %324
        %v326 = vadd.f32 %v304, %v305
        %327 = vadd.xlane.f32.xlu0 %v326
        %v328 = vpop.xlane.xlu0 %327
        %v329 = vadd.f32 %v306, %v307
        %330 = vadd.xlane.f32.xlu0 %v329
        %v331 = vpop.xlane.xlu0 %330
        %vm332 = vcmask 7168
        %v333 = vsel %vm332, %v270, %v310
        %v334 = vsel %vm332, %v273, %v313
        %v335 = vsel %vm332, %v276, %v316
        %v336 = vsel %vm332, %v279, %v319
        %v337 = vsel %vm332, %v282, %v322
        %v338 = vsel %vm332, %v285, %v325
        %v339 = vsel %vm332, %v288, %v328
        %v340 = vsel %vm332, %v291, %v331
        %v341 = vlaneseq
        %v342 = vshrl.u32 %v341, 7
        %v343 = vadd.s32 %v342, 8
        %v344 = vadd.s32 %v342, 16
        %v345 = vadd.s32 %v342, 24
        %v346 = vlaneseq
        %v347 = vand.u32 %v346, 127
        %v348 = vmul.u32 %v342, 2
        %v349 = vmul.u32 %v343, 2
        %v350 = vmul.u32 %v344, 2
        %v351 = vmul.u32 %v345, 2
        %vm352 = vcmp.ge.s32.totalorder %v347, %v348
        %vm353 = vcmp.ge.s32.totalorder %v347, %v349
        %vm354 = vcmp.ge.s32.totalorder %v347, %v350
        %vm355 = vcmp.ge.s32.totalorder %v347, %v351
        %v356 = vadd.s32 %v342, 1
        %v357 = vadd.s32 %v343, 1
        %v358 = vadd.s32 %v344, 1
        %v359 = vadd.s32 %v345, 1
        %v360 = vmul.u32 %v356, 2
        %v361 = vmul.u32 %v357, 2
        %v362 = vmul.u32 %v358, 2
        %v363 = vmul.u32 %v359, 2
        %vm364 = vcmp.lt.s32.totalorder %v347, %v360
        %vm365 = vcmp.lt.s32.totalorder %v347, %v361
        %vm366 = vcmp.lt.s32.totalorder %v347, %v362
        %vm367 = vcmp.lt.s32.totalorder %v347, %v363
        %vm368 = vmand %vm352, %vm364
        %vm369 = vmand %vm353, %vm365
        %vm370 = vmand %vm354, %vm366
        %vm371 = vmand %vm355, %vm367
        %v372 = vsel %vm368, 1, 0
        %v373 = vsel %vm369, 1, 0
        %v374 = vsel %vm370, 1, 0
        %v375 = vsel %vm371, 1, 0
        %v376 = vcvt.s32.f32 %v372
        %v377 = vcvt.s32.f32 %v373
        %v378 = vcvt.s32.f32 %v374
        %v379 = vcvt.s32.f32 %v375
        %vm380 = vcmask 523264
        %v382 = vsel %vm380, %v376, 0
        %v385 = vsel %vm380, %v377, 0
        %v388 = vsel %vm380, %v378, 0
        %v391 = vsel %vm380, %v379, 0
        %393 = vmatprep.subr.mxu0 0.0
        %394 = vmatpush1.msra.mxu0 0.0
        %395 = vmatprep.subr.mxu0 0.0
        %396 = vmatpush1.msra.mxu0 0.0
        %397 = vmatprep.subr.mxu0 0.0
        %398 = vmatpush1.msra.mxu0 0.0
        %399 = vmatprep.subr.mxu0 0.0
        %400 = vmatpush1.msra.mxu0 0.0
        %401 = vmatprep.subr.mxu0 0.0
        %402 = vmatpush1.msra.mxu0 0.0
        %403 = vmatprep.subr.mxu0 0.0
        %404 = vmatpush1.msra.mxu0 0.0
        %405 = vmatprep.subr.mxu0 0.0
        %406 = vmatpush1.msra.mxu0 0.0
        %407 = vmatprep.subr.mxu0 0.0
        %408 = vmatpush1.msra.mxu0 0.0
        %409 = vmatprep.subr.mxu0 0.0
        %410 = vmatpush1.msra.mxu0 %v340
        %411 = vmatprep.subr.mxu0 0.0
        %412 = vmatpush1.msra.mxu0 %v339
        %413 = vmatprep.subr.mxu0 0.0
        %414 = vmatpush1.msra.mxu0 %v338
        %415 = vmatprep.subr.mxu0 0.0
        %416 = vmatpush1.msra.mxu0 %v337
        %417 = vmatprep.subr.mxu0 0.0
        %418 = vmatpush1.msra.mxu0 %v336
        %419 = vmatprep.subr.mxu0 0.0
        %420 = vmatpush1.msra.mxu0 %v335
        %421 = vmatprep.subr.mxu0 0.0
        %422 = vmatpush1.msra.mxu0 %v334
        %423 = vmatprep.subr.mxu0 0.0
        %424 = vmatpush1.msra.mxu0 %v333
        %425 = vmatprep.subr.mxu0 0.0
        %426 = vmatpush2.msra.mxu0 0.0
        %427 = vmatprep.subr.mxu0 0.0
        %428 = vmatpush2.msra.mxu0 0.0
        %429 = vmatprep.subr.mxu0 0.0
        %430 = vmatpush2.msra.mxu0 0.0
        %431 = vmatprep.subr.mxu0 0.0
        %432 = vmatpush2.msra.mxu0 0.0
        %433 = vmatprep.subr.mxu0 0.0
        %434 = vmatpush2.msra.mxu0 0.0
        %435 = vmatprep.subr.mxu0 0.0
        %436 = vmatpush2.msra.mxu0 0.0
        %437 = vmatprep.subr.mxu0 0.0
        %438 = vmatpush2.msra.mxu0 0.0
        %439 = vmatprep.subr.mxu0 0.0
        %440 = vmatpush2.msra.mxu0 0.0
        %441 = vmatprep.subr.mxu0 0.0
        %442 = vmatpush2.msra.mxu0 0.0
        %443 = vmatprep.subr.mxu0 0.0
        %444 = vmatpush2.msra.mxu0 0.0
        %445 = vmatprep.subr.mxu0 0.0
        %446 = vmatpush2.msra.mxu0 0.0
        %447 = vmatprep.subr.mxu0 0.0
        %448 = vmatpush2.msra.mxu0 0.0
        %449 = vmatprep.subr.mxu0 0.0
        %450 = vmatpush2.msra.mxu0 0.0
        %451 = vmatprep.subr.mxu0 0.0
        %452 = vmatpush2.msra.mxu0 0.0
        %453 = vmatprep.subr.mxu0 0.0
        %454 = vmatpush2.msra.mxu0 0.0
        %455 = vmatprep.subr.mxu0 0.0
        %456 = vmatpush2.msra.mxu0 0.0
        %457 = vmatprep.mubr.f32.mxu0 0.0
        %458 = vmatmul.mubr.f32.gmra.mxu0 %v382
        %v459 = vpop.f32.mrf.mxu0
        %v460 = vadd.f32 0.0, %v459
        %v461 = vpop.f32.mrf.mxu0
        %462 = vmatprep.mubr.f32.mxu0 0.0
        %463 = vmatmul.mubr.f32.gmra.mxu0 %v385
        %v464 = vpop.f32.mrf.mxu0
        %v465 = vadd.f32 0.0, %v464
        %v466 = vpop.f32.mrf.mxu0
        %467 = vmatprep.mubr.f32.mxu0 0.0
        %468 = vmatmul.mubr.f32.gmra.mxu0 %v388
        %v469 = vpop.f32.mrf.mxu0
        %v470 = vadd.f32 0.0, %v469
        %v471 = vpop.f32.mrf.mxu0
        %472 = vmatprep.mubr.f32.mxu0 0.0
        %473 = vmatmul.mubr.f32.gmra.mxu0 %v391
        %v474 = vpop.f32.mrf.mxu0
        %v475 = vadd.f32 0.0, %v474
        %v476 = vpop.f32.mrf.mxu0
        %477 = vdwg.mxu0
        %v478 = vmul.f32 %v460, 0.001953125
        %v479 = vmul.f32 %v465, 0.001953125
        %v480 = vmul.f32 %v470, 0.001953125
        %v481 = vmul.f32 %v475, 0.001953125
        %v482 = vmul.f32 %v478, %v478
        %v483 = vmul.f32 %v479, %v479
        %v484 = vmul.f32 %v480, %v480
        %v485 = vmul.f32 %v481, %v481
        %490 = vrot.lane.b32.xlu0 %v482, 1
        %v491 = vpop.permute.xlu0 %490
        %492 = vrot.lane.b32.xlu0 %v483, 1
        %v493 = vpop.permute.xlu0 %492
        %494 = vrot.lane.b32.xlu0 %v484, 1
        %v495 = vpop.permute.xlu0 %494
        %496 = vrot.lane.b32.xlu0 %v485, 1
        %v497 = vpop.permute.xlu0 %496
        %v502 = vsub.f32 %v478, %v491
        %v503 = vsub.f32 %v479, %v493
        %v504 = vsub.f32 %v480, %v495
        %v505 = vsub.f32 %v481, %v497
        %v506 = vmax.f32 %v502, 0.0
        %v507 = vmax.f32 %v503, 0.0
        %v508 = vmax.f32 %v504, 0.0
        %v509 = vmax.f32 %v505, 0.0
        %v510 = vadd.f32 %v506, 1e-05
        %v511 = vadd.f32 %v507, 1e-05
        %v512 = vadd.f32 %v508, 1e-05
        %v513 = vadd.f32 %v509, 1e-05
        %v514 = vrsqrt.pop %v510
        %v515 = vrsqrt.pop %v511
        %v516 = vrsqrt.pop %v512
        %v517 = vrsqrt.pop %v513
        %v518 = vsel %vm332, %v478, %v514
        %v519 = vsel %vm332, %v479, %v515
        %v520 = vsel %vm332, %v480, %v516
        %v521 = vsel %vm332, %v481, %v517
        %522 = vxpose.xlu0.b32.start [1/16] %v376, 128
        %523 = vxpose.xlu0.b32.cont [2/16] %v377, 128
        %524 = vxpose.xlu0.b32.cont [3/16] %v378, 128
        %525 = vxpose.xlu0.b32.cont [4/16] %v379, 128
        %526 = vxpose.xlu0.b32.cont [5/16] 0.0, 128
        %527 = vxpose.xlu0.b32.cont [6/16] 0.0, 128
        %528 = vxpose.xlu0.b32.cont [7/16] 0.0, 128
        %529 = vxpose.xlu0.b32.cont [8/16] 0.0, 128
        %530 = vxpose.xlu0.b32.cont [9/16] 0.0, 128
        %531 = vxpose.xlu0.b32.cont [10/16] 0.0, 128
        %532 = vxpose.xlu0.b32.cont [11/16] 0.0, 128
        %533 = vxpose.xlu0.b32.cont [12/16] 0.0, 128
        %534 = vxpose.xlu0.b32.cont [13/16] 0.0, 128
        %535 = vxpose.xlu0.b32.cont [14/16] 0.0, 128
        %536 = vxpose.xlu0.b32.cont [15/16] 0.0, 128
        %537 = vxpose.xlu0.b32.end [16/16] 0.0, 128
        %v538 = vpop.trf.xlu0
        %v539 = vpop.trf.xlu0
        %v540 = vpop.trf.xlu0
        %v541 = vpop.trf.xlu0
        %v542 = vpop.trf.xlu0
        %v543 = vpop.trf.xlu0
        %v544 = vpop.trf.xlu0
        %v545 = vpop.trf.xlu0
        %v546 = vpop.trf.xlu0
        %v547 = vpop.trf.xlu0
        %v548 = vpop.trf.xlu0
        %v549 = vpop.trf.xlu0
        %v550 = vpop.trf.xlu0
        %v551 = vpop.trf.xlu0
        %v552 = vpop.trf.xlu0
        %v553 = vpop.trf.xlu0
        %vm554 = vcmask 261120
        %v556 = vsel %vm554, %v538, 0
        %v559 = vsel %vm554, %v539, 0
        %v562 = vsel %vm554, %v540, 0
        %v565 = vsel %vm554, %v541, 0
        %v568 = vsel %vm554, %v542, 0
        %v571 = vsel %vm554, %v543, 0
        %v574 = vsel %vm554, %v544, 0
        %v577 = vsel %vm554, %v545, 0
        %579 = vmatprep.subr.mxu0 0.0
        %580 = vmatpush1.msra.mxu0 0.0
        %581 = vmatprep.subr.mxu0 0.0
        %582 = vmatpush1.msra.mxu0 0.0
        %583 = vmatprep.subr.mxu0 0.0
        %584 = vmatpush1.msra.mxu0 0.0
        %585 = vmatprep.subr.mxu0 0.0
        %586 = vmatpush1.msra.mxu0 0.0
        %587 = vmatprep.subr.mxu0 0.0
        %588 = vmatpush1.msra.mxu0 0.0
        %589 = vmatprep.subr.mxu0 0.0
        %590 = vmatpush1.msra.mxu0 0.0
        %591 = vmatprep.subr.mxu0 0.0
        %592 = vmatpush1.msra.mxu0 0.0
        %593 = vmatprep.subr.mxu0 0.0
        %594 = vmatpush1.msra.mxu0 0.0
        %595 = vmatprep.subr.mxu0 0.0
        %596 = vmatpush1.msra.mxu0 0.0
        %597 = vmatprep.subr.mxu0 0.0
        %598 = vmatpush1.msra.mxu0 0.0
        %599 = vmatprep.subr.mxu0 0.0
        %600 = vmatpush1.msra.mxu0 0.0
        %601 = vmatprep.subr.mxu0 0.0
        %602 = vmatpush1.msra.mxu0 0.0
        %603 = vmatprep.subr.mxu0 0.0
        %604 = vmatpush1.msra.mxu0 %v521
        %605 = vmatprep.subr.mxu0 0.0
        %606 = vmatpush1.msra.mxu0 %v520
        %607 = vmatprep.subr.mxu0 0.0
        %608 = vmatpush1.msra.mxu0 %v519
        %609 = vmatprep.subr.mxu0 0.0
        %610 = vmatpush1.msra.mxu0 %v518
        %611 = vmatprep.subr.mxu0 0.0
        %612 = vmatpush2.msra.mxu0 0.0
        %613 = vmatprep.subr.mxu0 0.0
        %614 = vmatpush2.msra.mxu0 0.0
        %615 = vmatprep.subr.mxu0 0.0
        %616 = vmatpush2.msra.mxu0 0.0
        %617 = vmatprep.subr.mxu0 0.0
        %618 = vmatpush2.msra.mxu0 0.0
        %619 = vmatprep.subr.mxu0 0.0
        %620 = vmatpush2.msra.mxu0 0.0
        %621 = vmatprep.subr.mxu0 0.0
        %622 = vmatpush2.msra.mxu0 0.0
        %623 = vmatprep.subr.mxu0 0.0
        %624 = vmatpush2.msra.mxu0 0.0
        %625 = vmatprep.subr.mxu0 0.0
        %626 = vmatpush2.msra.mxu0 0.0
        %627 = vmatprep.subr.mxu0 0.0
        %628 = vmatpush2.msra.mxu0 0.0
        %629 = vmatprep.subr.mxu0 0.0
        %630 = vmatpush2.msra.mxu0 0.0
        %631 = vmatprep.subr.mxu0 0.0
        %632 = vmatpush2.msra.mxu0 0.0
        %633 = vmatprep.subr.mxu0 0.0
        %634 = vmatpush2.msra.mxu0 0.0
        %635 = vmatprep.subr.mxu0 0.0
        %636 = vmatpush2.msra.mxu0 0.0
        %637 = vmatprep.subr.mxu0 0.0
        %638 = vmatpush2.msra.mxu0 0.0
        %639 = vmatprep.subr.mxu0 0.0
        %640 = vmatpush2.msra.mxu0 0.0
        %641 = vmatprep.subr.mxu0 0.0
        %642 = vmatpush2.msra.mxu0 0.0
        %643 = vmatprep.mubr.f32.mxu0 0.0
        %644 = vmatmul.mubr.f32.gmra.mxu0 %v556
        %v645 = vpop.f32.mrf.mxu0
        %v646 = vadd.f32 0.0, %v645
        %v647 = vpop.f32.mrf.mxu0
        %648 = vmatprep.mubr.f32.mxu0 0.0
        %649 = vmatmul.mubr.f32.gmra.mxu0 %v559
        %v650 = vpop.f32.mrf.mxu0
        %v651 = vadd.f32 0.0, %v650
        %v652 = vpop.f32.mrf.mxu0
        %653 = vmatprep.mubr.f32.mxu0 0.0
        %654 = vmatmul.mubr.f32.gmra.mxu0 %v562
        %v655 = vpop.f32.mrf.mxu0
        %v656 = vadd.f32 0.0, %v655
        %v657 = vpop.f32.mrf.mxu0
        %658 = vmatprep.mubr.f32.mxu0 0.0
        %659 = vmatmul.mubr.f32.gmra.mxu0 %v565
        %v660 = vpop.f32.mrf.mxu0
        %v661 = vadd.f32 0.0, %v660
        %v662 = vpop.f32.mrf.mxu0
        %663 = vmatprep.mubr.f32.mxu0 0.0
        %664 = vmatmul.mubr.f32.gmra.mxu0 %v568
        %v665 = vpop.f32.mrf.mxu0
        %v666 = vadd.f32 0.0, %v665
        %v667 = vpop.f32.mrf.mxu0
        %668 = vmatprep.mubr.f32.mxu0 0.0
        %669 = vmatmul.mubr.f32.gmra.mxu0 %v571
        %v670 = vpop.f32.mrf.mxu0
        %v671 = vadd.f32 0.0, %v670
        %v672 = vpop.f32.mrf.mxu0
        %673 = vmatprep.mubr.f32.mxu0 0.0
        %674 = vmatmul.mubr.f32.gmra.mxu0 %v574
        %v675 = vpop.f32.mrf.mxu0
        %v676 = vadd.f32 0.0, %v675
        %v677 = vpop.f32.mrf.mxu0
        %678 = vmatprep.mubr.f32.mxu0 0.0
        %679 = vmatmul.mubr.f32.gmra.mxu0 %v577
        %v680 = vpop.f32.mrf.mxu0
        %v681 = vadd.f32 0.0, %v680
        %v682 = vpop.f32.mrf.mxu0
        %683 = vdwg.mxu0
        %v684 = vld [vmem:[%s1] sm:$0xff]
        %v685 = vld [vmem:[%s1 + $0x8] sm:$0xff]
        %v686 = vld [vmem:[%s1 + $0x10] sm:$0xff]
        %v687 = vld [vmem:[%s1 + $0x18] sm:$0xff]
        %v688 = vld [vmem:[%s1 + $0x20] sm:$0xff]
        %v689 = vld [vmem:[%s1 + $0x28] sm:$0xff]
        %v690 = vld [vmem:[%s1 + $0x30] sm:$0xff]
        %v691 = vld [vmem:[%s1 + $0x38] sm:$0xff]
        %700 = vrot.lane.b32.xlu0 %v646, 127
        %v701 = vpop.permute.xlu0 %700
        %702 = vrot.lane.b32.xlu0 %v651, 127
        %v703 = vpop.permute.xlu0 %702
        %704 = vrot.lane.b32.xlu0 %v656, 127
        %v705 = vpop.permute.xlu0 %704
        %706 = vrot.lane.b32.xlu0 %v661, 127
        %v707 = vpop.permute.xlu0 %706
        %708 = vrot.lane.b32.xlu0 %v666, 127
        %v709 = vpop.permute.xlu0 %708
        %710 = vrot.lane.b32.xlu0 %v671, 127
        %v711 = vpop.permute.xlu0 %710
        %712 = vrot.lane.b32.xlu0 %v676, 127
        %v713 = vpop.permute.xlu0 %712
        %714 = vrot.lane.b32.xlu0 %v681, 127
        %v715 = vpop.permute.xlu0 %714
        %v724 = vmul.f32 %v684, %v701
        %v725 = vmul.f32 %v685, %v703
        %v726 = vmul.f32 %v686, %v705
        %v727 = vmul.f32 %v687, %v707
        %v728 = vmul.f32 %v688, %v709
        %v729 = vmul.f32 %v689, %v711
        %v730 = vmul.f32 %v690, %v713
        %v731 = vmul.f32 %v691, %v715
        %v732 = vld [vmem:[%s2] sm:$0xff]
        %v733 = vld [vmem:[%s2 + $0x8] sm:$0xff]
        %v734 = vld [vmem:[%s2 + $0x10] sm:$0xff]
        %v735 = vld [vmem:[%s2 + $0x18] sm:$0xff]
        %v736 = vld [vmem:[%s2 + $0x20] sm:$0xff]
        %v737 = vld [vmem:[%s2 + $0x28] sm:$0xff]
        %v738 = vld [vmem:[%s2 + $0x30] sm:$0xff]
        %v739 = vld [vmem:[%s2 + $0x38] sm:$0xff]
        %v740 = vmul.f32 %v646, %v724
        %v741 = vmul.f32 %v651, %v725
        %v742 = vmul.f32 %v656, %v726
        %v743 = vmul.f32 %v661, %v727
        %v744 = vmul.f32 %v666, %v728
        %v745 = vmul.f32 %v671, %v729
        %v746 = vmul.f32 %v676, %v730
        %v747 = vmul.f32 %v681, %v731
        %v748 = vsub.f32 %v732, %v740
        %v749 = vsub.f32 %v733, %v741
        %v750 = vsub.f32 %v734, %v742
        %v751 = vsub.f32 %v735, %v743
        %v752 = vsub.f32 %v736, %v744
        %v753 = vsub.f32 %v737, %v745
        %v754 = vsub.f32 %v738, %v746
        %v755 = vsub.f32 %v739, %v747
        %757 = vset.pattern.permute.xlu0 0
        %758 = vperm.xlu0 %757, %v724
        %v759 = vpop.permute.xlu0 %758
        %762 = vset.pattern.permute.xlu0 0
        %763 = vperm.xlu0 %762, %v725
        %v764 = vpop.permute.xlu0 %763
        %767 = vset.pattern.permute.xlu0 0
        %768 = vperm.xlu0 %767, %v726
        %v769 = vpop.permute.xlu0 %768
        %772 = vset.pattern.permute.xlu0 0
        %773 = vperm.xlu0 %772, %v727
        %v774 = vpop.permute.xlu0 %773
        %777 = vset.pattern.permute.xlu0 0
        %778 = vperm.xlu0 %777, %v728
        %v779 = vpop.permute.xlu0 %778
        %782 = vset.pattern.permute.xlu0 0
        %783 = vperm.xlu0 %782, %v729
        %v784 = vpop.permute.xlu0 %783
        %787 = vset.pattern.permute.xlu0 0
        %788 = vperm.xlu0 %787, %v730
        %v789 = vpop.permute.xlu0 %788
        %792 = vset.pattern.permute.xlu0 0
        %793 = vperm.xlu0 %792, %v731
        %v794 = vpop.permute.xlu0 %793
        %v796 = vmul.f32 %v252, %v759
        %v797 = vmul.f32 %v253, %v759
        %v798 = vmul.f32 %v254, %v764
        %v799 = vmul.f32 %v255, %v764
        %v800 = vmul.f32 %v256, %v769
        %v801 = vmul.f32 %v257, %v769
        %v802 = vmul.f32 %v258, %v774
        %v803 = vmul.f32 %v259, %v774
        %v804 = vmul.f32 %v260, %v779
        %v805 = vmul.f32 %v261, %v779
        %v806 = vmul.f32 %v262, %v784
        %v807 = vmul.f32 %v263, %v784
        %v808 = vmul.f32 %v264, %v789
        %v809 = vmul.f32 %v265, %v789
        %v810 = vmul.f32 %v266, %v794
        %v811 = vmul.f32 %v267, %v794
        %813 = vset.pattern.permute.xlu0 0
        %814 = vperm.xlu0 %813, %v748
        %v815 = vpop.permute.xlu0 %814
        %818 = vset.pattern.permute.xlu0 0
        %819 = vperm.xlu0 %818, %v749
        %v820 = vpop.permute.xlu0 %819
        %823 = vset.pattern.permute.xlu0 0
        %824 = vperm.xlu0 %823, %v750
        %v825 = vpop.permute.xlu0 %824
        %828 = vset.pattern.permute.xlu0 0
        %829 = vperm.xlu0 %828, %v751
        %v830 = vpop.permute.xlu0 %829
        %833 = vset.pattern.permute.xlu0 0
        %834 = vperm.xlu0 %833, %v752
        %v835 = vpop.permute.xlu0 %834
        %838 = vset.pattern.permute.xlu0 0
        %839 = vperm.xlu0 %838, %v753
        %v840 = vpop.permute.xlu0 %839
        %843 = vset.pattern.permute.xlu0 0
        %844 = vperm.xlu0 %843, %v754
        %v845 = vpop.permute.xlu0 %844
        %848 = vset.pattern.permute.xlu0 0
        %849 = vperm.xlu0 %848, %v755
        %v850 = vpop.permute.xlu0 %849
        %v852 = vadd.f32 %v796, %v815
        %v853 = vadd.f32 %v797, %v815
        %v854 = vadd.f32 %v798, %v820
        %v855 = vadd.f32 %v799, %v820
        %v856 = vadd.f32 %v800, %v825
        %v857 = vadd.f32 %v801, %v825
        %v858 = vadd.f32 %v802, %v830
        %v859 = vadd.f32 %v803, %v830
        %v860 = vadd.f32 %v804, %v835
        %v861 = vadd.f32 %v805, %v835
        %v862 = vadd.f32 %v806, %v840
        %v863 = vadd.f32 %v807, %v840
        %v864 = vadd.f32 %v808, %v845
        %v865 = vadd.f32 %v809, %v845
        %v866 = vadd.f32 %v810, %v850
        %v867 = vadd.f32 %v811, %v850
        %v868 = vpack.c.bf16 %v854, %v852
        %v869 = vpack.c.bf16 %v855, %v853
        %v870 = vpack.c.bf16 %v858, %v856
        %v871 = vpack.c.bf16 %v859, %v857
        %v872 = vpack.c.bf16 %v862, %v860
        %v873 = vpack.c.bf16 %v863, %v861
        %v874 = vpack.c.bf16 %v866, %v864
        %v875 = vpack.c.bf16 %v867, %v865
        %v876 = vld [vmem:[%s3] sm:$0xf]
        %v877 = vld [vmem:[%s3 + $0x4] sm:$0xf]
        %v878 = vld [vmem:[%s3 + $0x8] sm:$0xf]
        %v879 = vld [vmem:[%s3 + $0xc] sm:$0xf]
        %v880 = vld [vmem:[%s3 + $0x10] sm:$0xf]
        %v881 = vld [vmem:[%s3 + $0x14] sm:$0xf]
        %v882 = vld [vmem:[%s3 + $0x18] sm:$0xf]
        %v883 = vld [vmem:[%s3 + $0x1c] sm:$0xf]
        %v884 = vld [vmem:[%s3 + $0x20] sm:$0xf]
        %v885 = vld [vmem:[%s3 + $0x24] sm:$0xf]
        %v886 = vld [vmem:[%s3 + $0x28] sm:$0xf]
        %v887 = vld [vmem:[%s3 + $0x2c] sm:$0xf]
        %v888 = vld [vmem:[%s3 + $0x30] sm:$0xf]
        %v889 = vld [vmem:[%s3 + $0x34] sm:$0xf]
        %v890 = vld [vmem:[%s3 + $0x38] sm:$0xf]
        %v891 = vld [vmem:[%s3 + $0x3c] sm:$0xf]
        %v892 = vld [vmem:[%s3 + $0x40] sm:$0xf]
        %v893 = vld [vmem:[%s3 + $0x44] sm:$0xf]
        %v894 = vld [vmem:[%s3 + $0x48] sm:$0xf]
        %v895 = vld [vmem:[%s3 + $0x4c] sm:$0xf]
        %v896 = vld [vmem:[%s3 + $0x50] sm:$0xf]
        %v897 = vld [vmem:[%s3 + $0x54] sm:$0xf]
        %v898 = vld [vmem:[%s3 + $0x58] sm:$0xf]
        %v899 = vld [vmem:[%s3 + $0x5c] sm:$0xf]
        %v924 = vunpack.c.l.b16 %v876
        %v925 = vunpack.c.l.b16 %v877
        %v926 = vunpack.c.l.b16 %v878
        %v927 = vunpack.c.l.b16 %v879
        %v928 = vunpack.c.l.b16 %v880
        %v929 = vunpack.c.l.b16 %v881
        %v930 = vunpack.c.l.b16 %v882
        %v931 = vunpack.c.l.b16 %v883
        %v932 = vunpack.c.l.b16 %v884
        %v933 = vunpack.c.l.b16 %v885
        %v934 = vunpack.c.l.b16 %v886
        %v935 = vunpack.c.l.b16 %v887
        %v936 = vunpack.c.l.b16 %v888
        %v937 = vunpack.c.l.b16 %v889
        %v938 = vunpack.c.l.b16 %v890
        %v939 = vunpack.c.l.b16 %v891
        %v940 = vunpack.c.l.b16 %v892
        %v941 = vunpack.c.l.b16 %v893
        %v942 = vunpack.c.l.b16 %v894
        %v943 = vunpack.c.l.b16 %v895
        %v944 = vunpack.c.l.b16 %v896
        %v945 = vunpack.c.l.b16 %v897
        %v946 = vunpack.c.l.b16 %v898
        %v947 = vunpack.c.l.b16 %v899
        %v948 = vpack.c.b16 %v925, %v924
        %v949 = vpack.c.b16 %v927, %v926
        %v950 = vpack.c.b16 %v929, %v928
        %v951 = vpack.c.b16 %v931, %v930
        %v952 = vpack.c.b16 %v933, %v932
        %v953 = vpack.c.b16 %v935, %v934
        %v954 = vpack.c.b16 %v937, %v936
        %v955 = vpack.c.b16 %v939, %v938
        %v956 = vpack.c.b16 %v941, %v940
        %v957 = vpack.c.b16 %v943, %v942
        %v958 = vpack.c.b16 %v945, %v944
        %v959 = vpack.c.b16 %v947, %v946
        %v961 = vsel %vm380, %v948, 0
        %v964 = vsel %vm380, %v949, 0
        %v967 = vsel %vm380, %v950, 0
        %v970 = vsel %vm380, %v951, 0
        %v973 = vsel %vm380, %v952, 0
        %v976 = vsel %vm380, %v953, 0
        %v979 = vsel %vm380, %v954, 0
        %v982 = vsel %vm380, %v955, 0
        %v985 = vsel %vm380, %v956, 0
        %v988 = vsel %vm380, %v957, 0
        %v991 = vsel %vm380, %v958, 0
        %v994 = vsel %vm380, %v959, 0
        %996 = vmatprep.subr.bf16.mxu0 0
        %997 = vmatpush1.bf16.msra.mxu0 0
        %998 = vmatprep.subr.bf16.mxu0 0
        %999 = vmatpush1.bf16.msra.mxu0 0
        %1000 = vmatprep.subr.bf16.mxu0 0
        %1001 = vmatpush1.bf16.msra.mxu0 0
        %1002 = vmatprep.subr.bf16.mxu0 0
        %1003 = vmatpush1.bf16.msra.mxu0 0
        %1004 = vmatprep.subr.bf16.mxu0 %v875
        %1005 = vmatpush1.bf16.msra.mxu0 %v874
        %1006 = vmatprep.subr.bf16.mxu0 %v873
        %1007 = vmatpush1.bf16.msra.mxu0 %v872
        %1008 = vmatprep.subr.bf16.mxu0 %v871
        %1009 = vmatpush1.bf16.msra.mxu0 %v870
        %1010 = vmatprep.subr.bf16.mxu0 %v869
        %1011 = vmatpush1.bf16.msra.mxu0 %v868
        %1012 = vmatprep.subr.bf16.mxu0 0
        %1013 = vmatpush2.bf16.msra.mxu0 0
        %1014 = vmatprep.subr.bf16.mxu0 0
        %1015 = vmatpush2.bf16.msra.mxu0 0
        %1016 = vmatprep.subr.bf16.mxu0 0
        %1017 = vmatpush2.bf16.msra.mxu0 0
        %1018 = vmatprep.subr.bf16.mxu0 0
        %1019 = vmatpush2.bf16.msra.mxu0 0
        %1020 = vmatprep.subr.bf16.mxu0 0
        %1021 = vmatpush2.bf16.msra.mxu0 0
        %1022 = vmatprep.subr.bf16.mxu0 0
        %1023 = vmatpush2.bf16.msra.mxu0 0
        %1024 = vmatprep.subr.bf16.mxu0 0
        %1025 = vmatpush2.bf16.msra.mxu0 0
        %1026 = vmatprep.subr.bf16.mxu0 0
        %1027 = vmatpush2.bf16.msra.mxu0 0
        %1028 = vmatprep.mubr.bf16.mxu0 0
        %1029 = vmatmul.mubr.bf16.gmra.mxu0 %v961
        %v1030 = vpop.f32.mrf.mxu0
        %v1031 = vadd.f32 0.0, %v1030
        %v1032 = vpop.f32.mrf.mxu0
        %v1033 = vadd.f32 0.0, %v1032
        %v1034 = vpop.f32.mrf.mxu0
        %v1035 = vadd.f32 0.0, %v1034
        %v1036 = vpop.f32.mrf.mxu0
        %v1037 = vadd.f32 0.0, %v1036
        %1038 = vmatprep.mubr.bf16.mxu0 0
        %1039 = vmatmul.mubr.bf16.gmra.mxu0 %v964
        %v1040 = vpop.f32.mrf.mxu0
        %v1041 = vadd.f32 0.0, %v1040
        %v1042 = vpop.f32.mrf.mxu0
        %v1043 = vadd.f32 0.0, %v1042
        %v1044 = vpop.f32.mrf.mxu0
        %v1045 = vadd.f32 0.0, %v1044
        %v1046 = vpop.f32.mrf.mxu0
        %v1047 = vadd.f32 0.0, %v1046
        %1048 = vmatprep.mubr.bf16.mxu0 0
        %1049 = vmatmul.mubr.bf16.gmra.mxu0 %v967
        %v1050 = vpop.f32.mrf.mxu0
        %v1051 = vadd.f32 0.0, %v1050
        %v1052 = vpop.f32.mrf.mxu0
        %v1053 = vadd.f32 0.0, %v1052
        %v1054 = vpop.f32.mrf.mxu0
        %v1055 = vadd.f32 0.0, %v1054
        %v1056 = vpop.f32.mrf.mxu0
        %v1057 = vadd.f32 0.0, %v1056
        %1058 = vmatprep.mubr.bf16.mxu0 0
        %1059 = vmatmul.mubr.bf16.gmra.mxu0 %v970
        %v1060 = vpop.f32.mrf.mxu0
        %v1061 = vadd.f32 0.0, %v1060
        %v1062 = vpop.f32.mrf.mxu0
        %v1063 = vadd.f32 0.0, %v1062
        %v1064 = vpop.f32.mrf.mxu0
        %v1065 = vadd.f32 0.0, %v1064
        %v1066 = vpop.f32.mrf.mxu0
        %v1067 = vadd.f32 0.0, %v1066
        %1068 = vmatprep.mubr.bf16.mxu0 0
        %1069 = vmatmul.mubr.bf16.gmra.mxu0 %v973
        %v1070 = vpop.f32.mrf.mxu0
        %v1071 = vadd.f32 0.0, %v1070
        %v1072 = vpop.f32.mrf.mxu0
        %v1073 = vadd.f32 0.0, %v1072
        %v1074 = vpop.f32.mrf.mxu0
        %v1075 = vadd.f32 0.0, %v1074
        %v1076 = vpop.f32.mrf.mxu0
        %v1077 = vadd.f32 0.0, %v1076
        %1078 = vmatprep.mubr.bf16.mxu0 0
        %1079 = vmatmul.mubr.bf16.gmra.mxu0 %v976
        %v1080 = vpop.f32.mrf.mxu0
        %v1081 = vadd.f32 0.0, %v1080
        %v1082 = vpop.f32.mrf.mxu0
        %v1083 = vadd.f32 0.0, %v1082
        %v1084 = vpop.f32.mrf.mxu0
        %v1085 = vadd.f32 0.0, %v1084
        %v1086 = vpop.f32.mrf.mxu0
        %v1087 = vadd.f32 0.0, %v1086
        %1088 = vmatprep.mubr.bf16.mxu0 0
        %1089 = vmatmul.mubr.bf16.gmra.mxu0 %v979
        %v1090 = vpop.f32.mrf.mxu0
        %v1091 = vadd.f32 0.0, %v1090
        %v1092 = vpop.f32.mrf.mxu0
        %v1093 = vadd.f32 0.0, %v1092
        %v1094 = vpop.f32.mrf.mxu0
        %v1095 = vadd.f32 0.0, %v1094
        %v1096 = vpop.f32.mrf.mxu0
        %v1097 = vadd.f32 0.0, %v1096
        %1098 = vmatprep.mubr.bf16.mxu0 0
        %1099 = vmatmul.mubr.bf16.gmra.mxu0 %v982
        %v1100 = vpop.f32.mrf.mxu0
        %v1101 = vadd.f32 0.0, %v1100
        %v1102 = vpop.f32.mrf.mxu0
        %v1103 = vadd.f32 0.0, %v1102
        %v1104 = vpop.f32.mrf.mxu0
        %v1105 = vadd.f32 0.0, %v1104
        %v1106 = vpop.f32.mrf.mxu0
        %v1107 = vadd.f32 0.0, %v1106
        %1108 = vmatprep.mubr.bf16.mxu0 0
        %1109 = vmatmul.mubr.bf16.gmra.mxu0 %v985
        %v1110 = vpop.f32.mrf.mxu0
        %v1111 = vadd.f32 0.0, %v1110
        %v1112 = vpop.f32.mrf.mxu0
        %v1113 = vadd.f32 0.0, %v1112
        %v1114 = vpop.f32.mrf.mxu0
        %v1115 = vadd.f32 0.0, %v1114
        %v1116 = vpop.f32.mrf.mxu0
        %v1117 = vadd.f32 0.0, %v1116
        %1118 = vmatprep.mubr.bf16.mxu0 0
        %1119 = vmatmul.mubr.bf16.gmra.mxu0 %v988
        %v1120 = vpop.f32.mrf.mxu0
        %v1121 = vadd.f32 0.0, %v1120
        %v1122 = vpop.f32.mrf.mxu0
        %v1123 = vadd.f32 0.0, %v1122
        %v1124 = vpop.f32.mrf.mxu0
        %v1125 = vadd.f32 0.0, %v1124
        %v1126 = vpop.f32.mrf.mxu0
        %v1127 = vadd.f32 0.0, %v1126
        %1128 = vmatprep.mubr.bf16.mxu0 0
        %1129 = vmatmul.mubr.bf16.gmra.mxu0 %v991
        %v1130 = vpop.f32.mrf.mxu0
        %v1131 = vadd.f32 0.0, %v1130
        %v1132 = vpop.f32.mrf.mxu0
        %v1133 = vadd.f32 0.0, %v1132
        %v1134 = vpop.f32.mrf.mxu0
        %v1135 = vadd.f32 0.0, %v1134
        %v1136 = vpop.f32.mrf.mxu0
        %v1137 = vadd.f32 0.0, %v1136
        %1138 = vmatprep.mubr.bf16.mxu0 0
        %1139 = vmatmul.mubr.bf16.gmra.mxu0 %v994
        %v1140 = vpop.f32.mrf.mxu0
        %v1141 = vadd.f32 0.0, %v1140
        %v1142 = vpop.f32.mrf.mxu0
        %v1143 = vadd.f32 0.0, %v1142
        %v1144 = vpop.f32.mrf.mxu0
        %v1145 = vadd.f32 0.0, %v1144
        %v1146 = vpop.f32.mrf.mxu0
        %v1147 = vadd.f32 0.0, %v1146
        %1148 = vdwg.mxu0
        %v1149 = vpack.c.bf16 %v1035, %v1031
        %v1150 = vpack.c.bf16 %v1037, %v1033
        %v1151 = vpack.c.bf16 %v1045, %v1041
        %v1152 = vpack.c.bf16 %v1047, %v1043
        %v1153 = vpack.c.bf16 %v1055, %v1051
        %v1154 = vpack.c.bf16 %v1057, %v1053
        %v1155 = vpack.c.bf16 %v1065, %v1061
        %v1156 = vpack.c.bf16 %v1067, %v1063
        %v1157 = vpack.c.bf16 %v1075, %v1071
        %v1158 = vpack.c.bf16 %v1077, %v1073
        %v1159 = vpack.c.bf16 %v1085, %v1081
        %v1160 = vpack.c.bf16 %v1087, %v1083
        %v1161 = vpack.c.bf16 %v1095, %v1091
        %v1162 = vpack.c.bf16 %v1097, %v1093
        %v1163 = vpack.c.bf16 %v1105, %v1101
        %v1164 = vpack.c.bf16 %v1107, %v1103
        %v1165 = vpack.c.bf16 %v1115, %v1111
        %v1166 = vpack.c.bf16 %v1117, %v1113
        %v1167 = vpack.c.bf16 %v1125, %v1121
        %v1168 = vpack.c.bf16 %v1127, %v1123
        %v1169 = vpack.c.bf16 %v1135, %v1131
        %v1170 = vpack.c.bf16 %v1137, %v1133
        %v1171 = vpack.c.bf16 %v1145, %v1141
        %v1172 = vpack.c.bf16 %v1147, %v1143
        %1173 = vxpose.xlu0.c.b16.start [1/8] %v1149, 128
        %1174 = vxpose.xlu0.c.b16.cont [2/8] %v1151, 128
        %1175 = vxpose.xlu0.c.b16.cont [3/8] 0, 128
        %1176 = vxpose.xlu0.c.b16.cont [4/8] 0, 128
        %1177 = vxpose.xlu0.c.b16.cont [5/8] 0, 128
        %1178 = vxpose.xlu0.c.b16.cont [6/8] 0, 128
        %1179 = vxpose.xlu0.c.b16.cont [7/8] 0, 128
        %1180 = vxpose.xlu0.c.b16.end [8/8] 0, 128
        %v1181 = vpop.trf.xlu0
        %v1182 = vpop.trf.xlu0
        %v1183 = vpop.trf.xlu0
        %v1184 = vpop.trf.xlu0
        %v1185 = vpop.trf.xlu0
        %v1186 = vpop.trf.xlu0
        %v1187 = vpop.trf.xlu0
        %v1188 = vpop.trf.xlu0
        %1189 = vxpose.xlu0.c.b16.start [1/8] %v1150, 128
        %1190 = vxpose.xlu0.c.b16.cont [2/8] %v1152, 128
        %1191 = vxpose.xlu0.c.b16.cont [3/8] 0, 128
        %1192 = vxpose.xlu0.c.b16.cont [4/8] 0, 128
        %1193 = vxpose.xlu0.c.b16.cont [5/8] 0, 128
        %1194 = vxpose.xlu0.c.b16.cont [6/8] 0, 128
        %1195 = vxpose.xlu0.c.b16.cont [7/8] 0, 128
        %1196 = vxpose.xlu0.c.b16.end [8/8] 0, 128
        %v1197 = vpop.trf.xlu0
        %v1198 = vpop.trf.xlu0
        %v1199 = vpop.trf.xlu0
        %v1200 = vpop.trf.xlu0
        %v1201 = vpop.trf.xlu0
        %v1202 = vpop.trf.xlu0
        %v1203 = vpop.trf.xlu0
        %v1204 = vpop.trf.xlu0
        %v1206 = vsel %vm554, %v1181, 0
        %v1209 = vsel %vm554, %v1182, 0
        %v1212 = vsel %vm554, %v1183, 0
        %v1215 = vsel %vm554, %v1184, 0
        %v1218 = vsel %vm554, %v1185, 0
        %v1221 = vsel %vm554, %v1186, 0
        %v1224 = vsel %vm554, %v1187, 0
        %v1227 = vsel %vm554, %v1188, 0
        %v1230 = vsel %vm554, %v1197, 0
        %v1233 = vsel %vm554, %v1198, 0
        %v1236 = vsel %vm554, %v1199, 0
        %v1239 = vsel %vm554, %v1200, 0
        %v1242 = vsel %vm554, %v1201, 0
        %v1245 = vsel %vm554, %v1202, 0
        %v1248 = vsel %vm554, %v1203, 0
        %v1251 = vsel %vm554, %v1204, 0
        %1253 = vmatprep.subr.bf16.mxu0 0
        %1254 = vmatpush1.bf16.msra.mxu0 0
        %1255 = vmatprep.subr.bf16.mxu0 0
        %1256 = vmatpush1.bf16.msra.mxu0 0
        %1257 = vmatprep.subr.bf16.mxu0 0
        %1258 = vmatpush1.bf16.msra.mxu0 0
        %1259 = vmatprep.subr.bf16.mxu0 0
        %1260 = vmatpush1.bf16.msra.mxu0 0
        %1261 = vmatprep.subr.bf16.mxu0 0
        %1262 = vmatpush1.bf16.msra.mxu0 0
        %1263 = vmatprep.subr.bf16.mxu0 0
        %1264 = vmatpush1.bf16.msra.mxu0 0
        %1265 = vmatprep.subr.bf16.mxu0 %v1160
        %1266 = vmatpush1.bf16.msra.mxu0 %v1159
        %1267 = vmatprep.subr.bf16.mxu0 %v1158
        %1268 = vmatpush1.bf16.msra.mxu0 %v1157
        %1269 = vmatprep.subr.bf16.mxu0 0
        %1270 = vmatpush2.bf16.msra.mxu0 0
        %1271 = vmatprep.subr.bf16.mxu0 0
        %1272 = vmatpush2.bf16.msra.mxu0 0
        %1273 = vmatprep.subr.bf16.mxu0 0
        %1274 = vmatpush2.bf16.msra.mxu0 0
        %1275 = vmatprep.subr.bf16.mxu0 0
        %1276 = vmatpush2.bf16.msra.mxu0 0
        %1277 = vmatprep.subr.bf16.mxu0 0
        %1278 = vmatpush2.bf16.msra.mxu0 0
        %1279 = vmatprep.subr.bf16.mxu0 0
        %1280 = vmatpush2.bf16.msra.mxu0 0
        %1281 = vmatprep.subr.bf16.mxu0 0
        %1282 = vmatpush2.bf16.msra.mxu0 0
        %1283 = vmatprep.subr.bf16.mxu0 0
        %1284 = vmatpush2.bf16.msra.mxu0 0
        %1285 = vmatprep.mubr.bf16.mxu0 0
        %1286 = vmatmul.mubr.bf16.gmra.mxu0 %v1206
        %v1287 = vpop.f32.mrf.mxu0
        %v1288 = vadd.f32 0.0, %v1287
        %v1289 = vpop.f32.mrf.mxu0
        %v1290 = vadd.f32 0.0, %v1289
        %v1291 = vpop.f32.mrf.mxu0
        %v1292 = vadd.f32 0.0, %v1291
        %v1293 = vpop.f32.mrf.mxu0
        %v1294 = vadd.f32 0.0, %v1293
        %1295 = vmatprep.mubr.bf16.mxu0 0
        %1296 = vmatmul.mubr.bf16.gmra.mxu0 %v1209
        %v1297 = vpop.f32.mrf.mxu0
        %v1298 = vadd.f32 0.0, %v1297
        %v1299 = vpop.f32.mrf.mxu0
        %v1300 = vadd.f32 0.0, %v1299
        %v1301 = vpop.f32.mrf.mxu0
        %v1302 = vadd.f32 0.0, %v1301
        %v1303 = vpop.f32.mrf.mxu0
        %v1304 = vadd.f32 0.0, %v1303
        %1305 = vmatprep.mubr.bf16.mxu0 0
        %1306 = vmatmul.mubr.bf16.gmra.mxu0 %v1212
        %v1307 = vpop.f32.mrf.mxu0
        %v1308 = vadd.f32 0.0, %v1307
        %v1309 = vpop.f32.mrf.mxu0
        %v1310 = vadd.f32 0.0, %v1309
        %v1311 = vpop.f32.mrf.mxu0
        %v1312 = vadd.f32 0.0, %v1311
        %v1313 = vpop.f32.mrf.mxu0
        %v1314 = vadd.f32 0.0, %v1313
        %1315 = vmatprep.mubr.bf16.mxu0 0
        %1316 = vmatmul.mubr.bf16.gmra.mxu0 %v1215
        %v1317 = vpop.f32.mrf.mxu0
        %v1318 = vadd.f32 0.0, %v1317
        %v1319 = vpop.f32.mrf.mxu0
        %v1320 = vadd.f32 0.0, %v1319
        %v1321 = vpop.f32.mrf.mxu0
        %v1322 = vadd.f32 0.0, %v1321
        %v1323 = vpop.f32.mrf.mxu0
        %v1324 = vadd.f32 0.0, %v1323
        %1325 = vmatprep.mubr.bf16.mxu0 0
        %1326 = vmatmul.mubr.bf16.gmra.mxu0 %v1218
        %v1327 = vpop.f32.mrf.mxu0
        %v1328 = vadd.f32 0.0, %v1327
        %v1329 = vpop.f32.mrf.mxu0
        %v1330 = vadd.f32 0.0, %v1329
        %v1331 = vpop.f32.mrf.mxu0
        %v1332 = vadd.f32 0.0, %v1331
        %v1333 = vpop.f32.mrf.mxu0
        %v1334 = vadd.f32 0.0, %v1333
        %1335 = vmatprep.mubr.bf16.mxu0 0
        %1336 = vmatmul.mubr.bf16.gmra.mxu0 %v1221
        %v1337 = vpop.f32.mrf.mxu0
        %v1338 = vadd.f32 0.0, %v1337
        %v1339 = vpop.f32.mrf.mxu0
        %v1340 = vadd.f32 0.0, %v1339
        %v1341 = vpop.f32.mrf.mxu0
        %v1342 = vadd.f32 0.0, %v1341
        %v1343 = vpop.f32.mrf.mxu0
        %v1344 = vadd.f32 0.0, %v1343
        %1345 = vmatprep.mubr.bf16.mxu0 0
        %1346 = vmatmul.mubr.bf16.gmra.mxu0 %v1224
        %v1347 = vpop.f32.mrf.mxu0
        %v1348 = vadd.f32 0.0, %v1347
        %v1349 = vpop.f32.mrf.mxu0
        %v1350 = vadd.f32 0.0, %v1349
        %v1351 = vpop.f32.mrf.mxu0
        %v1352 = vadd.f32 0.0, %v1351
        %v1353 = vpop.f32.mrf.mxu0
        %v1354 = vadd.f32 0.0, %v1353
        %1355 = vmatprep.mubr.bf16.mxu0 0
        %1356 = vmatmul.mubr.bf16.gmra.mxu0 %v1227
        %v1357 = vpop.f32.mrf.mxu0
        %v1358 = vadd.f32 0.0, %v1357
        %v1359 = vpop.f32.mrf.mxu0
        %v1360 = vadd.f32 0.0, %v1359
        %v1361 = vpop.f32.mrf.mxu0
        %v1362 = vadd.f32 0.0, %v1361
        %v1363 = vpop.f32.mrf.mxu0
        %v1364 = vadd.f32 0.0, %v1363
        %1365 = vmatprep.mubr.bf16.mxu0 0
        %1366 = vmatmul.mubr.bf16.gmra.mxu0 %v1230
        %v1367 = vpop.f32.mrf.mxu0
        %v1368 = vadd.f32 0.0, %v1367
        %v1369 = vpop.f32.mrf.mxu0
        %v1370 = vadd.f32 0.0, %v1369
        %v1371 = vpop.f32.mrf.mxu0
        %v1372 = vadd.f32 0.0, %v1371
        %v1373 = vpop.f32.mrf.mxu0
        %v1374 = vadd.f32 0.0, %v1373
        %1375 = vmatprep.mubr.bf16.mxu0 0
        %1376 = vmatmul.mubr.bf16.gmra.mxu0 %v1233
        %v1377 = vpop.f32.mrf.mxu0
        %v1378 = vadd.f32 0.0, %v1377
        %v1379 = vpop.f32.mrf.mxu0
        %v1380 = vadd.f32 0.0, %v1379
        %v1381 = vpop.f32.mrf.mxu0
        %v1382 = vadd.f32 0.0, %v1381
        %v1383 = vpop.f32.mrf.mxu0
        %v1384 = vadd.f32 0.0, %v1383
        %1385 = vmatprep.mubr.bf16.mxu0 0
        %1386 = vmatmul.mubr.bf16.gmra.mxu0 %v1236
        %v1387 = vpop.f32.mrf.mxu0
        %v1388 = vadd.f32 0.0, %v1387
        %v1389 = vpop.f32.mrf.mxu0
        %v1390 = vadd.f32 0.0, %v1389
        %v1391 = vpop.f32.mrf.mxu0
        %v1392 = vadd.f32 0.0, %v1391
        %v1393 = vpop.f32.mrf.mxu0
        %v1394 = vadd.f32 0.0, %v1393
        %1395 = vmatprep.mubr.bf16.mxu0 0
        %1396 = vmatmul.mubr.bf16.gmra.mxu0 %v1239
        %v1397 = vpop.f32.mrf.mxu0
        %v1398 = vadd.f32 0.0, %v1397
        %v1399 = vpop.f32.mrf.mxu0
        %v1400 = vadd.f32 0.0, %v1399
        %v1401 = vpop.f32.mrf.mxu0
        %v1402 = vadd.f32 0.0, %v1401
        %v1403 = vpop.f32.mrf.mxu0
        %v1404 = vadd.f32 0.0, %v1403
        %1405 = vmatprep.mubr.bf16.mxu0 0
        %1406 = vmatmul.mubr.bf16.gmra.mxu0 %v1242
        %v1407 = vpop.f32.mrf.mxu0
        %v1408 = vadd.f32 0.0, %v1407
        %v1409 = vpop.f32.mrf.mxu0
        %v1410 = vadd.f32 0.0, %v1409
        %v1411 = vpop.f32.mrf.mxu0
        %v1412 = vadd.f32 0.0, %v1411
        %v1413 = vpop.f32.mrf.mxu0
        %v1414 = vadd.f32 0.0, %v1413
        %1415 = vmatprep.mubr.bf16.mxu0 0
        %1416 = vmatmul.mubr.bf16.gmra.mxu0 %v1245
        %v1417 = vpop.f32.mrf.mxu0
        %v1418 = vadd.f32 0.0, %v1417
        %v1419 = vpop.f32.mrf.mxu0
        %v1420 = vadd.f32 0.0, %v1419
        %v1421 = vpop.f32.mrf.mxu0
        %v1422 = vadd.f32 0.0, %v1421
        %v1423 = vpop.f32.mrf.mxu0
        %v1424 = vadd.f32 0.0, %v1423
        %1425 = vmatprep.mubr.bf16.mxu0 0
        %1426 = vmatmul.mubr.bf16.gmra.mxu0 %v1248
        %v1427 = vpop.f32.mrf.mxu0
        %v1428 = vadd.f32 0.0, %v1427
        %v1429 = vpop.f32.mrf.mxu0
        %v1430 = vadd.f32 0.0, %v1429
        %v1431 = vpop.f32.mrf.mxu0
        %v1432 = vadd.f32 0.0, %v1431
        %v1433 = vpop.f32.mrf.mxu0
        %v1434 = vadd.f32 0.0, %v1433
        %1435 = vmatprep.mubr.bf16.mxu0 0
        %1436 = vmatmul.mubr.bf16.gmra.mxu0 %v1251
        %v1437 = vpop.f32.mrf.mxu0
        %v1438 = vadd.f32 0.0, %v1437
        %v1439 = vpop.f32.mrf.mxu0
        %v1440 = vadd.f32 0.0, %v1439
        %v1441 = vpop.f32.mrf.mxu0
        %v1442 = vadd.f32 0.0, %v1441
        %v1443 = vpop.f32.mrf.mxu0
        %v1444 = vadd.f32 0.0, %v1443
        %1445 = vdwg.mxu0
        %1446 = vxpose.xlu0.c.b16.start [1/8] %v1153, 128
        %1447 = vxpose.xlu0.c.b16.cont [2/8] %v1155, 128
        %1448 = vxpose.xlu0.c.b16.cont [3/8] 0, 128
        %1449 = vxpose.xlu0.c.b16.cont [4/8] 0, 128
        %1450 = vxpose.xlu0.c.b16.cont [5/8] 0, 128
        %1451 = vxpose.xlu0.c.b16.cont [6/8] 0, 128
        %1452 = vxpose.xlu0.c.b16.cont [7/8] 0, 128
        %1453 = vxpose.xlu0.c.b16.end [8/8] 0, 128
        %v1454 = vpop.trf.xlu0
        %v1455 = vpop.trf.xlu0
        %v1456 = vpop.trf.xlu0
        %v1457 = vpop.trf.xlu0
        %v1458 = vpop.trf.xlu0
        %v1459 = vpop.trf.xlu0
        %v1460 = vpop.trf.xlu0
        %v1461 = vpop.trf.xlu0
        %1462 = vxpose.xlu0.c.b16.start [1/8] %v1154, 128
        %1463 = vxpose.xlu0.c.b16.cont [2/8] %v1156, 128
        %1464 = vxpose.xlu0.c.b16.cont [3/8] 0, 128
        %1465 = vxpose.xlu0.c.b16.cont [4/8] 0, 128
        %1466 = vxpose.xlu0.c.b16.cont [5/8] 0, 128
        %1467 = vxpose.xlu0.c.b16.cont [6/8] 0, 128
        %1468 = vxpose.xlu0.c.b16.cont [7/8] 0, 128
        %1469 = vxpose.xlu0.c.b16.end [8/8] 0, 128
        %v1470 = vpop.trf.xlu0
        %v1471 = vpop.trf.xlu0
        %v1472 = vpop.trf.xlu0
        %v1473 = vpop.trf.xlu0
        %v1474 = vpop.trf.xlu0
        %v1475 = vpop.trf.xlu0
        %v1476 = vpop.trf.xlu0
        %v1477 = vpop.trf.xlu0
        %v1479 = vsel %vm554, %v1454, 0
        %v1482 = vsel %vm554, %v1455, 0
        %v1485 = vsel %vm554, %v1456, 0
        %v1488 = vsel %vm554, %v1457, 0
        %v1491 = vsel %vm554, %v1458, 0
        %v1494 = vsel %vm554, %v1459, 0
        %v1497 = vsel %vm554, %v1460, 0
        %v1500 = vsel %vm554, %v1461, 0
        %v1503 = vsel %vm554, %v1470, 0
        %v1506 = vsel %vm554, %v1471, 0
        %v1509 = vsel %vm554, %v1472, 0
        %v1512 = vsel %vm554, %v1473, 0
        %v1515 = vsel %vm554, %v1474, 0
        %v1518 = vsel %vm554, %v1475, 0
        %v1521 = vsel %vm554, %v1476, 0
        %v1524 = vsel %vm554, %v1477, 0
        %1526 = vmatprep.subr.bf16.mxu0 0
        %1527 = vmatpush1.bf16.msra.mxu0 0
        %1528 = vmatprep.subr.bf16.mxu0 0
        %1529 = vmatpush1.bf16.msra.mxu0 0
        %1530 = vmatprep.subr.bf16.mxu0 0
        %1531 = vmatpush1.bf16.msra.mxu0 0
        %1532 = vmatprep.subr.bf16.mxu0 0
        %1533 = vmatpush1.bf16.msra.mxu0 0
        %1534 = vmatprep.subr.bf16.mxu0 0
        %1535 = vmatpush1.bf16.msra.mxu0 0
        %1536 = vmatprep.subr.bf16.mxu0 0
        %1537 = vmatpush1.bf16.msra.mxu0 0
        %1538 = vmatprep.subr.bf16.mxu0 %v1164
        %1539 = vmatpush1.bf16.msra.mxu0 %v1163
        %1540 = vmatprep.subr.bf16.mxu0 %v1162
        %1541 = vmatpush1.bf16.msra.mxu0 %v1161
        %1542 = vmatprep.subr.bf16.mxu0 0
        %1543 = vmatpush2.bf16.msra.mxu0 0
        %1544 = vmatprep.subr.bf16.mxu0 0
        %1545 = vmatpush2.bf16.msra.mxu0 0
        %1546 = vmatprep.subr.bf16.mxu0 0
        %1547 = vmatpush2.bf16.msra.mxu0 0
        %1548 = vmatprep.subr.bf16.mxu0 0
        %1549 = vmatpush2.bf16.msra.mxu0 0
        %1550 = vmatprep.subr.bf16.mxu0 0
        %1551 = vmatpush2.bf16.msra.mxu0 0
        %1552 = vmatprep.subr.bf16.mxu0 0
        %1553 = vmatpush2.bf16.msra.mxu0 0
        %1554 = vmatprep.subr.bf16.mxu0 0
        %1555 = vmatpush2.bf16.msra.mxu0 0
        %1556 = vmatprep.subr.bf16.mxu0 0
        %1557 = vmatpush2.bf16.msra.mxu0 0
        %1558 = vmatprep.mubr.bf16.mxu0 0
        %1559 = vmatmul.mubr.bf16.gmra.mxu0 %v1479
        %v1560 = vpop.f32.mrf.mxu0
        %v1561 = vadd.f32 0.0, %v1560
        %v1562 = vpop.f32.mrf.mxu0
        %v1563 = vadd.f32 0.0, %v1562
        %v1564 = vpop.f32.mrf.mxu0
        %v1565 = vadd.f32 0.0, %v1564
        %v1566 = vpop.f32.mrf.mxu0
        %v1567 = vadd.f32 0.0, %v1566
        %1568 = vmatprep.mubr.bf16.mxu0 0
        %1569 = vmatmul.mubr.bf16.gmra.mxu0 %v1482
        %v1570 = vpop.f32.mrf.mxu0
        %v1571 = vadd.f32 0.0, %v1570
        %v1572 = vpop.f32.mrf.mxu0
        %v1573 = vadd.f32 0.0, %v1572
        %v1574 = vpop.f32.mrf.mxu0
        %v1575 = vadd.f32 0.0, %v1574
        %v1576 = vpop.f32.mrf.mxu0
        %v1577 = vadd.f32 0.0, %v1576
        %1578 = vmatprep.mubr.bf16.mxu0 0
        %1579 = vmatmul.mubr.bf16.gmra.mxu0 %v1485
        %v1580 = vpop.f32.mrf.mxu0
        %v1581 = vadd.f32 0.0, %v1580
        %v1582 = vpop.f32.mrf.mxu0
        %v1583 = vadd.f32 0.0, %v1582
        %v1584 = vpop.f32.mrf.mxu0
        %v1585 = vadd.f32 0.0, %v1584
        %v1586 = vpop.f32.mrf.mxu0
        %v1587 = vadd.f32 0.0, %v1586
        %1588 = vmatprep.mubr.bf16.mxu0 0
        %1589 = vmatmul.mubr.bf16.gmra.mxu0 %v1488
        %v1590 = vpop.f32.mrf.mxu0
        %v1591 = vadd.f32 0.0, %v1590
        %v1592 = vpop.f32.mrf.mxu0
        %v1593 = vadd.f32 0.0, %v1592
        %v1594 = vpop.f32.mrf.mxu0
        %v1595 = vadd.f32 0.0, %v1594
        %v1596 = vpop.f32.mrf.mxu0
        %v1597 = vadd.f32 0.0, %v1596
        %1598 = vmatprep.mubr.bf16.mxu0 0
        %1599 = vmatmul.mubr.bf16.gmra.mxu0 %v1491
        %v1600 = vpop.f32.mrf.mxu0
        %v1601 = vadd.f32 0.0, %v1600
        %v1602 = vpop.f32.mrf.mxu0
        %v1603 = vadd.f32 0.0, %v1602
        %v1604 = vpop.f32.mrf.mxu0
        %v1605 = vadd.f32 0.0, %v1604
        %v1606 = vpop.f32.mrf.mxu0
        %v1607 = vadd.f32 0.0, %v1606
        %1608 = vmatprep.mubr.bf16.mxu0 0
        %1609 = vmatmul.mubr.bf16.gmra.mxu0 %v1494
        %v1610 = vpop.f32.mrf.mxu0
        %v1611 = vadd.f32 0.0, %v1610
        %v1612 = vpop.f32.mrf.mxu0
        %v1613 = vadd.f32 0.0, %v1612
        %v1614 = vpop.f32.mrf.mxu0
        %v1615 = vadd.f32 0.0, %v1614
        %v1616 = vpop.f32.mrf.mxu0
        %v1617 = vadd.f32 0.0, %v1616
        %1618 = vmatprep.mubr.bf16.mxu0 0
        %1619 = vmatmul.mubr.bf16.gmra.mxu0 %v1497
        %v1620 = vpop.f32.mrf.mxu0
        %v1621 = vadd.f32 0.0, %v1620
        %v1622 = vpop.f32.mrf.mxu0
        %v1623 = vadd.f32 0.0, %v1622
        %v1624 = vpop.f32.mrf.mxu0
        %v1625 = vadd.f32 0.0, %v1624
        %v1626 = vpop.f32.mrf.mxu0
        %v1627 = vadd.f32 0.0, %v1626
        %1628 = vmatprep.mubr.bf16.mxu0 0
        %1629 = vmatmul.mubr.bf16.gmra.mxu0 %v1500
        %v1630 = vpop.f32.mrf.mxu0
        %v1631 = vadd.f32 0.0, %v1630
        %v1632 = vpop.f32.mrf.mxu0
        %v1633 = vadd.f32 0.0, %v1632
        %v1634 = vpop.f32.mrf.mxu0
        %v1635 = vadd.f32 0.0, %v1634
        %v1636 = vpop.f32.mrf.mxu0
        %v1637 = vadd.f32 0.0, %v1636
        %1638 = vmatprep.mubr.bf16.mxu0 0
        %1639 = vmatmul.mubr.bf16.gmra.mxu0 %v1503
        %v1640 = vpop.f32.mrf.mxu0
        %v1641 = vadd.f32 0.0, %v1640
        %v1642 = vpop.f32.mrf.mxu0
        %v1643 = vadd.f32 0.0, %v1642
        %v1644 = vpop.f32.mrf.mxu0
        %v1645 = vadd.f32 0.0, %v1644
        %v1646 = vpop.f32.mrf.mxu0
        %v1647 = vadd.f32 0.0, %v1646
        %1648 = vmatprep.mubr.bf16.mxu0 0
        %1649 = vmatmul.mubr.bf16.gmra.mxu0 %v1506
        %v1650 = vpop.f32.mrf.mxu0
        %v1651 = vadd.f32 0.0, %v1650
        %v1652 = vpop.f32.mrf.mxu0
        %v1653 = vadd.f32 0.0, %v1652
        %v1654 = vpop.f32.mrf.mxu0
        %v1655 = vadd.f32 0.0, %v1654
        %v1656 = vpop.f32.mrf.mxu0
        %v1657 = vadd.f32 0.0, %v1656
        %1658 = vmatprep.mubr.bf16.mxu0 0
        %1659 = vmatmul.mubr.bf16.gmra.mxu0 %v1509
        %v1660 = vpop.f32.mrf.mxu0
        %v1661 = vadd.f32 0.0, %v1660
        %v1662 = vpop.f32.mrf.mxu0
        %v1663 = vadd.f32 0.0, %v1662
        %v1664 = vpop.f32.mrf.mxu0
        %v1665 = vadd.f32 0.0, %v1664
        %v1666 = vpop.f32.mrf.mxu0
        %v1667 = vadd.f32 0.0, %v1666
        %1668 = vmatprep.mubr.bf16.mxu0 0
        %1669 = vmatmul.mubr.bf16.gmra.mxu0 %v1512
        %v1670 = vpop.f32.mrf.mxu0
        %v1671 = vadd.f32 0.0, %v1670
        %v1672 = vpop.f32.mrf.mxu0
        %v1673 = vadd.f32 0.0, %v1672
        %v1674 = vpop.f32.mrf.mxu0
        %v1675 = vadd.f32 0.0, %v1674
        %v1676 = vpop.f32.mrf.mxu0
        %v1677 = vadd.f32 0.0, %v1676
        %1678 = vmatprep.mubr.bf16.mxu0 0
        %1679 = vmatmul.mubr.bf16.gmra.mxu0 %v1515
        %v1680 = vpop.f32.mrf.mxu0
        %v1681 = vadd.f32 0.0, %v1680
        %v1682 = vpop.f32.mrf.mxu0
        %v1683 = vadd.f32 0.0, %v1682
        %v1684 = vpop.f32.mrf.mxu0
        %v1685 = vadd.f32 0.0, %v1684
        %v1686 = vpop.f32.mrf.mxu0
        %v1687 = vadd.f32 0.0, %v1686
        %1688 = vmatprep.mubr.bf16.mxu0 0
        %1689 = vmatmul.mubr.bf16.gmra.mxu0 %v1518
        %v1690 = vpop.f32.mrf.mxu0
        %v1691 = vadd.f32 0.0, %v1690
        %v1692 = vpop.f32.mrf.mxu0
        %v1693 = vadd.f32 0.0, %v1692
        %v1694 = vpop.f32.mrf.mxu0
        %v1695 = vadd.f32 0.0, %v1694
        %v1696 = vpop.f32.mrf.mxu0
        %v1697 = vadd.f32 0.0, %v1696
        %1698 = vmatprep.mubr.bf16.mxu0 0
        %1699 = vmatmul.mubr.bf16.gmra.mxu0 %v1521
        %v1700 = vpop.f32.mrf.mxu0
        %v1701 = vadd.f32 0.0, %v1700
        %v1702 = vpop.f32.mrf.mxu0
        %v1703 = vadd.f32 0.0, %v1702
        %v1704 = vpop.f32.mrf.mxu0
        %v1705 = vadd.f32 0.0, %v1704
        %v1706 = vpop.f32.mrf.mxu0
        %v1707 = vadd.f32 0.0, %v1706
        %1708 = vmatprep.mubr.bf16.mxu0 0
        %1709 = vmatmul.mubr.bf16.gmra.mxu0 %v1524
        %v1710 = vpop.f32.mrf.mxu0
        %v1711 = vadd.f32 0.0, %v1710
        %v1712 = vpop.f32.mrf.mxu0
        %v1713 = vadd.f32 0.0, %v1712
        %v1714 = vpop.f32.mrf.mxu0
        %v1715 = vadd.f32 0.0, %v1714
        %v1716 = vpop.f32.mrf.mxu0
        %v1717 = vadd.f32 0.0, %v1716
        %1718 = vdwg.mxu0
        %v1719 = vmax.f32 %v1288, %v1290
        %1720 = vmax.xlane.f32.xlu0 %v1719
        %v1721 = vpop.xlane.xlu0 %1720
        %v1722 = vmax.f32 %v1292, %v1294
        %1723 = vmax.xlane.f32.xlu0 %v1722
        %v1724 = vpop.xlane.xlu0 %1723
        %v1725 = vmax.f32 %v1298, %v1300
        %1726 = vmax.xlane.f32.xlu0 %v1725
        %v1727 = vpop.xlane.xlu0 %1726
        %v1728 = vmax.f32 %v1302, %v1304
        %1729 = vmax.xlane.f32.xlu0 %v1728
        %v1730 = vpop.xlane.xlu0 %1729
        %v1731 = vmax.f32 %v1308, %v1310
        %1732 = vmax.xlane.f32.xlu0 %v1731
        %v1733 = vpop.xlane.xlu0 %1732
        %v1734 = vmax.f32 %v1312, %v1314
        %1735 = vmax.xlane.f32.xlu0 %v1734
        %v1736 = vpop.xlane.xlu0 %1735
        %v1737 = vmax.f32 %v1318, %v1320
        %1738 = vmax.xlane.f32.xlu0 %v1737
        %v1739 = vpop.xlane.xlu0 %1738
        %v1740 = vmax.f32 %v1322, %v1324
        %1741 = vmax.xlane.f32.xlu0 %v1740
        %v1742 = vpop.xlane.xlu0 %1741
        %v1743 = vmax.f32 %v1328, %v1330
        %1744 = vmax.xlane.f32.xlu0 %v1743
        %v1745 = vpop.xlane.xlu0 %1744
        %v1746 = vmax.f32 %v1332, %v1334
        %1747 = vmax.xlane.f32.xlu0 %v1746
        %v1748 = vpop.xlane.xlu0 %1747
        %v1749 = vmax.f32 %v1338, %v1340
        %1750 = vmax.xlane.f32.xlu0 %v1749
        %v1751 = vpop.xlane.xlu0 %1750
        %v1752 = vmax.f32 %v1342, %v1344
        %1753 = vmax.xlane.f32.xlu0 %v1752
        %v1754 = vpop.xlane.xlu0 %1753
        %v1755 = vmax.f32 %v1348, %v1350
        %1756 = vmax.xlane.f32.xlu0 %v1755
        %v1757 = vpop.xlane.xlu0 %1756
        %v1758 = vmax.f32 %v1352, %v1354
        %1759 = vmax.xlane.f32.xlu0 %v1758
        %v1760 = vpop.xlane.xlu0 %1759
        %v1761 = vmax.f32 %v1358, %v1360
        %1762 = vmax.xlane.f32.xlu0 %v1761
        %v1763 = vpop.xlane.xlu0 %1762
        %v1764 = vmax.f32 %v1362, %v1364
        %1765 = vmax.xlane.f32.xlu0 %v1764
        %v1766 = vpop.xlane.xlu0 %1765
        %v1767 = vmax.f32 %v1368, %v1370
        %1768 = vmax.xlane.f32.xlu0 %v1767
        %v1769 = vpop.xlane.xlu0 %1768
        %v1770 = vmax.f32 %v1372, %v1374
        %1771 = vmax.xlane.f32.xlu0 %v1770
        %v1772 = vpop.xlane.xlu0 %1771
        %v1773 = vmax.f32 %v1378, %v1380
        %1774 = vmax.xlane.f32.xlu0 %v1773
        %v1775 = vpop.xlane.xlu0 %1774
        %v1776 = vmax.f32 %v1382, %v1384
        %1777 = vmax.xlane.f32.xlu0 %v1776
        %v1778 = vpop.xlane.xlu0 %1777
        %v1779 = vmax.f32 %v1388, %v1390
        %1780 = vmax.xlane.f32.xlu0 %v1779
        %v1781 = vpop.xlane.xlu0 %1780
        %v1782 = vmax.f32 %v1392, %v1394
        %1783 = vmax.xlane.f32.xlu0 %v1782
        %v1784 = vpop.xlane.xlu0 %1783
        %v1785 = vmax.f32 %v1398, %v1400
        %1786 = vmax.xlane.f32.xlu0 %v1785
        %v1787 = vpop.xlane.xlu0 %1786
        %v1788 = vmax.f32 %v1402, %v1404
        %1789 = vmax.xlane.f32.xlu0 %v1788
        %v1790 = vpop.xlane.xlu0 %1789
        %v1791 = vmax.f32 %v1408, %v1410
        %1792 = vmax.xlane.f32.xlu0 %v1791
        %v1793 = vpop.xlane.xlu0 %1792
        %v1794 = vmax.f32 %v1412, %v1414
        %1795 = vmax.xlane.f32.xlu0 %v1794
        %v1796 = vpop.xlane.xlu0 %1795
        %v1797 = vmax.f32 %v1418, %v1420
        %1798 = vmax.xlane.f32.xlu0 %v1797
        %v1799 = vpop.xlane.xlu0 %1798
        %v1800 = vmax.f32 %v1422, %v1424
        %1801 = vmax.xlane.f32.xlu0 %v1800
        %v1802 = vpop.xlane.xlu0 %1801
        %v1803 = vmax.f32 %v1428, %v1430
        %1804 = vmax.xlane.f32.xlu0 %v1803
        %v1805 = vpop.xlane.xlu0 %1804
        %v1806 = vmax.f32 %v1432, %v1434
        %1807 = vmax.xlane.f32.xlu0 %v1806
        %v1808 = vpop.xlane.xlu0 %1807
        %v1809 = vmax.f32 %v1438, %v1440
        %1810 = vmax.xlane.f32.xlu0 %v1809
        %v1811 = vpop.xlane.xlu0 %1810
        %v1812 = vmax.f32 %v1442, %v1444
        %1813 = vmax.xlane.f32.xlu0 %v1812
        %v1814 = vpop.xlane.xlu0 %1813
        %v1815 = vmax.f32 %v1561, %v1563
        %1816 = vmax.xlane.f32.xlu0 %v1815
        %v1817 = vpop.xlane.xlu0 %1816
        %v1818 = vmax.f32 %v1565, %v1567
        %1819 = vmax.xlane.f32.xlu0 %v1818
        %v1820 = vpop.xlane.xlu0 %1819
        %v1821 = vmax.f32 %v1571, %v1573
        %1822 = vmax.xlane.f32.xlu0 %v1821
        %v1823 = vpop.xlane.xlu0 %1822
        %v1824 = vmax.f32 %v1575, %v1577
        %1825 = vmax.xlane.f32.xlu0 %v1824
        %v1826 = vpop.xlane.xlu0 %1825
        %v1827 = vmax.f32 %v1581, %v1583
        %1828 = vmax.xlane.f32.xlu0 %v1827
        %v1829 = vpop.xlane.xlu0 %1828
        %v1830 = vmax.f32 %v1585, %v1587
        %1831 = vmax.xlane.f32.xlu0 %v1830
        %v1832 = vpop.xlane.xlu0 %1831
        %v1833 = vmax.f32 %v1591, %v1593
        %1834 = vmax.xlane.f32.xlu0 %v1833
        %v1835 = vpop.xlane.xlu0 %1834
        %v1836 = vmax.f32 %v1595, %v1597
        %1837 = vmax.xlane.f32.xlu0 %v1836
        %v1838 = vpop.xlane.xlu0 %1837
        %v1839 = vmax.f32 %v1601, %v1603
        %1840 = vmax.xlane.f32.xlu0 %v1839
        %v1841 = vpop.xlane.xlu0 %1840
        %v1842 = vmax.f32 %v1605, %v1607
        %1843 = vmax.xlane.f32.xlu0 %v1842
        %v1844 = vpop.xlane.xlu0 %1843
        %v1845 = vmax.f32 %v1611, %v1613
        %1846 = vmax.xlane.f32.xlu0 %v1845
        %v1847 = vpop.xlane.xlu0 %1846
        %v1848 = vmax.f32 %v1615, %v1617
        %1849 = vmax.xlane.f32.xlu0 %v1848
        %v1850 = vpop.xlane.xlu0 %1849
        %v1851 = vmax.f32 %v1621, %v1623
        %1852 = vmax.xlane.f32.xlu0 %v1851
        %v1853 = vpop.xlane.xlu0 %1852
        %v1854 = vmax.f32 %v1625, %v1627
        %1855 = vmax.xlane.f32.xlu0 %v1854
        %v1856 = vpop.xlane.xlu0 %1855
        %v1857 = vmax.f32 %v1631, %v1633
        %1858 = vmax.xlane.f32.xlu0 %v1857
        %v1859 = vpop.xlane.xlu0 %1858
        %v1860 = vmax.f32 %v1635, %v1637
        %1861 = vmax.xlane.f32.xlu0 %v1860
        %v1862 = vpop.xlane.xlu0 %1861
        %v1863 = vmax.f32 %v1641, %v1643
        %1864 = vmax.xlane.f32.xlu0 %v1863
        %v1865 = vpop.xlane.xlu0 %1864
        %v1866 = vmax.f32 %v1645, %v1647
        %1867 = vmax.xlane.f32.xlu0 %v1866
        %v1868 = vpop.xlane.xlu0 %1867
        %v1869 = vmax.f32 %v1651, %v1653
        %1870 = vmax.xlane.f32.xlu0 %v1869
        %v1871 = vpop.xlane.xlu0 %1870
        %v1872 = vmax.f32 %v1655, %v1657
        %1873 = vmax.xlane.f32.xlu0 %v1872
        %v1874 = vpop.xlane.xlu0 %1873
        %v1875 = vmax.f32 %v1661, %v1663
        %1876 = vmax.xlane.f32.xlu0 %v1875
        %v1877 = vpop.xlane.xlu0 %1876
        %v1878 = vmax.f32 %v1665, %v1667
        %1879 = vmax.xlane.f32.xlu0 %v1878
        %v1880 = vpop.xlane.xlu0 %1879
        %v1881 = vmax.f32 %v1671, %v1673
        %1882 = vmax.xlane.f32.xlu0 %v1881
        %v1883 = vpop.xlane.xlu0 %1882
        %v1884 = vmax.f32 %v1675, %v1677
        %1885 = vmax.xlane.f32.xlu0 %v1884
        %v1886 = vpop.xlane.xlu0 %1885
        %v1887 = vmax.f32 %v1681, %v1683
        %1888 = vmax.xlane.f32.xlu0 %v1887
        %v1889 = vpop.xlane.xlu0 %1888
        %v1890 = vmax.f32 %v1685, %v1687
        %1891 = vmax.xlane.f32.xlu0 %v1890
        %v1892 = vpop.xlane.xlu0 %1891
        %v1893 = vmax.f32 %v1691, %v1693
        %1894 = vmax.xlane.f32.xlu0 %v1893
        %v1895 = vpop.xlane.xlu0 %1894
        %v1896 = vmax.f32 %v1695, %v1697
        %1897 = vmax.xlane.f32.xlu0 %v1896
        %v1898 = vpop.xlane.xlu0 %1897
        %v1899 = vmax.f32 %v1701, %v1703
        %1900 = vmax.xlane.f32.xlu0 %v1899
        %v1901 = vpop.xlane.xlu0 %1900
        %v1902 = vmax.f32 %v1705, %v1707
        %1903 = vmax.xlane.f32.xlu0 %v1902
        %v1904 = vpop.xlane.xlu0 %1903
        %v1905 = vmax.f32 %v1711, %v1713
        %1906 = vmax.xlane.f32.xlu0 %v1905
        %v1907 = vpop.xlane.xlu0 %1906
        %v1908 = vmax.f32 %v1715, %v1717
        %1909 = vmax.xlane.f32.xlu0 %v1908
        %v1910 = vpop.xlane.xlu0 %1909
        %v1911 = vsub.f32 %v1288, %v1721
        %v1912 = vsub.f32 %v1290, %v1721
        %v1913 = vsub.f32 %v1292, %v1724
        %v1914 = vsub.f32 %v1294, %v1724
        %v1915 = vsub.f32 %v1298, %v1727
        %v1916 = vsub.f32 %v1300, %v1727
        %v1917 = vsub.f32 %v1302, %v1730
        %v1918 = vsub.f32 %v1304, %v1730
        %v1919 = vsub.f32 %v1308, %v1733
        %v1920 = vsub.f32 %v1310, %v1733
        %v1921 = vsub.f32 %v1312, %v1736
        %v1922 = vsub.f32 %v1314, %v1736
        %v1923 = vsub.f32 %v1318, %v1739
        %v1924 = vsub.f32 %v1320, %v1739
        %v1925 = vsub.f32 %v1322, %v1742
        %v1926 = vsub.f32 %v1324, %v1742
        %v1927 = vsub.f32 %v1328, %v1745
        %v1928 = vsub.f32 %v1330, %v1745
        %v1929 = vsub.f32 %v1332, %v1748
        %v1930 = vsub.f32 %v1334, %v1748
        %v1931 = vsub.f32 %v1338, %v1751
        %v1932 = vsub.f32 %v1340, %v1751
        %v1933 = vsub.f32 %v1342, %v1754
        %v1934 = vsub.f32 %v1344, %v1754
        %v1935 = vsub.f32 %v1348, %v1757
        %v1936 = vsub.f32 %v1350, %v1757
        %v1937 = vsub.f32 %v1352, %v1760
        %v1938 = vsub.f32 %v1354, %v1760
        %v1939 = vsub.f32 %v1358, %v1763
        %v1940 = vsub.f32 %v1360, %v1763
        %v1941 = vsub.f32 %v1362, %v1766
        %v1942 = vsub.f32 %v1364, %v1766
        %v1943 = vsub.f32 %v1368, %v1769
        %v1944 = vsub.f32 %v1370, %v1769
        %v1945 = vsub.f32 %v1372, %v1772
        %v1946 = vsub.f32 %v1374, %v1772
        %v1947 = vsub.f32 %v1378, %v1775
        %v1948 = vsub.f32 %v1380, %v1775
        %v1949 = vsub.f32 %v1382, %v1778
        %v1950 = vsub.f32 %v1384, %v1778
        %v1951 = vsub.f32 %v1388, %v1781
        %v1952 = vsub.f32 %v1390, %v1781
        %v1953 = vsub.f32 %v1392, %v1784
        %v1954 = vsub.f32 %v1394, %v1784
        %v1955 = vsub.f32 %v1398, %v1787
        %v1956 = vsub.f32 %v1400, %v1787
        %v1957 = vsub.f32 %v1402, %v1790
        %v1958 = vsub.f32 %v1404, %v1790
        %v1959 = vsub.f32 %v1408, %v1793
        %v1960 = vsub.f32 %v1410, %v1793
        %v1961 = vsub.f32 %v1412, %v1796
        %v1962 = vsub.f32 %v1414, %v1796
        %v1963 = vsub.f32 %v1418, %v1799
        %v1964 = vsub.f32 %v1420, %v1799
        %v1965 = vsub.f32 %v1422, %v1802
        %v1966 = vsub.f32 %v1424, %v1802
        %v1967 = vsub.f32 %v1428, %v1805
        %v1968 = vsub.f32 %v1430, %v1805
        %v1969 = vsub.f32 %v1432, %v1808
        %v1970 = vsub.f32 %v1434, %v1808
        %v1971 = vsub.f32 %v1438, %v1811
        %v1972 = vsub.f32 %v1440, %v1811
        %v1973 = vsub.f32 %v1442, %v1814
        %v1974 = vsub.f32 %v1444, %v1814
        %v1975 = vsub.f32 %v1561, %v1817
        %v1976 = vsub.f32 %v1563, %v1817
        %v1977 = vsub.f32 %v1565, %v1820
        %v1978 = vsub.f32 %v1567, %v1820
        %v1979 = vsub.f32 %v1571, %v1823
        %v1980 = vsub.f32 %v1573, %v1823
        %v1981 = vsub.f32 %v1575, %v1826
        %v1982 = vsub.f32 %v1577, %v1826
        %v1983 = vsub.f32 %v1581, %v1829
        %v1984 = vsub.f32 %v1583, %v1829
        %v1985 = vsub.f32 %v1585, %v1832
        %v1986 = vsub.f32 %v1587, %v1832
        %v1987 = vsub.f32 %v1591, %v1835
        %v1988 = vsub.f32 %v1593, %v1835
        %v1989 = vsub.f32 %v1595, %v1838
        %v1990 = vsub.f32 %v1597, %v1838
        %v1991 = vsub.f32 %v1601, %v1841
        %v1992 = vsub.f32 %v1603, %v1841
        %v1993 = vsub.f32 %v1605, %v1844
        %v1994 = vsub.f32 %v1607, %v1844
        %v1995 = vsub.f32 %v1611, %v1847
        %v1996 = vsub.f32 %v1613, %v1847
        %v1997 = vsub.f32 %v1615, %v1850
        %v1998 = vsub.f32 %v1617, %v1850
        %v1999 = vsub.f32 %v1621, %v1853
        %v2000 = vsub.f32 %v1623, %v1853
        %v2001 = vsub.f32 %v1625, %v1856
        %v2002 = vsub.f32 %v1627, %v1856
        %v2003 = vsub.f32 %v1631, %v1859
        %v2004 = vsub.f32 %v1633, %v1859
        %v2005 = vsub.f32 %v1635, %v1862
        %v2006 = vsub.f32 %v1637, %v1862
        %v2007 = vsub.f32 %v1641, %v1865
        %v2008 = vsub.f32 %v1643, %v1865
        %v2009 = vsub.f32 %v1645, %v1868
        %v2010 = vsub.f32 %v1647, %v1868
        %v2011 = vsub.f32 %v1651, %v1871
        %v2012 = vsub.f32 %v1653, %v1871
        %v2013 = vsub.f32 %v1655, %v1874
        %v2014 = vsub.f32 %v1657, %v1874
        %v2015 = vsub.f32 %v1661, %v1877
        %v2016 = vsub.f32 %v1663, %v1877
        %v2017 = vsub.f32 %v1665, %v1880
        %v2018 = vsub.f32 %v1667, %v1880
        %v2019 = vsub.f32 %v1671, %v1883
        %v2020 = vsub.f32 %v1673, %v1883
        %v2021 = vsub.f32 %v1675, %v1886
        %v2022 = vsub.f32 %v1677, %v1886
        %v2023 = vsub.f32 %v1681, %v1889
        %v2024 = vsub.f32 %v1683, %v1889
        %v2025 = vsub.f32 %v1685, %v1892
        %v2026 = vsub.f32 %v1687, %v1892
        %v2027 = vsub.f32 %v1691, %v1895
        %v2028 = vsub.f32 %v1693, %v1895
        %v2029 = vsub.f32 %v1695, %v1898
        %v2030 = vsub.f32 %v1697, %v1898
        %v2031 = vsub.f32 %v1701, %v1901
        %v2032 = vsub.f32 %v1703, %v1901
        %v2033 = vsub.f32 %v1705, %v1904
        %v2034 = vsub.f32 %v1707, %v1904
        %v2035 = vsub.f32 %v1711, %v1907
        %v2036 = vsub.f32 %v1713, %v1907
        %v2037 = vsub.f32 %v1715, %v1910
        %v2038 = vsub.f32 %v1717, %v1910
        %v2039 = vmul.f32 %v1911, 1.442695
        %v2040 = vpow.pop %v2039
        %v2041 = vmul.f32 %v1912, 1.442695
        %v2042 = vpow.pop %v2041
        %v2043 = vmul.f32 %v1913, 1.442695
        %v2044 = vpow.pop %v2043
        %v2045 = vmul.f32 %v1914, 1.442695
        %v2046 = vpow.pop %v2045
        %v2047 = vmul.f32 %v1915, 1.442695
        %v2048 = vpow.pop %v2047
        %v2049 = vmul.f32 %v1916, 1.442695
        %v2050 = vpow.pop %v2049
        %v2051 = vmul.f32 %v1917, 1.442695
        %v2052 = vpow.pop %v2051
        %v2053 = vmul.f32 %v1918, 1.442695
        %v2054 = vpow.pop %v2053
        %v2055 = vmul.f32 %v1919, 1.442695
        %v2056 = vpow.pop %v2055
        %v2057 = vmul.f32 %v1920, 1.442695
        %v2058 = vpow.pop %v2057
        %v2059 = vmul.f32 %v1921, 1.442695
        %v2060 = vpow.pop %v2059
        %v2061 = vmul.f32 %v1922, 1.442695
        %v2062 = vpow.pop %v2061
        %v2063 = vmul.f32 %v1923, 1.442695
        %v2064 = vpow.pop %v2063
        %v2065 = vmul.f32 %v1924, 1.442695
        %v2066 = vpow.pop %v2065
        %v2067 = vmul.f32 %v1925, 1.442695
        %v2068 = vpow.pop %v2067
        %v2069 = vmul.f32 %v1926, 1.442695
        %v2070 = vpow.pop %v2069
        %v2071 = vmul.f32 %v1927, 1.442695
        %v2072 = vpow.pop %v2071
        %v2073 = vmul.f32 %v1928, 1.442695
        %v2074 = vpow.pop %v2073
        %v2075 = vmul.f32 %v1929, 1.442695
        %v2076 = vpow.pop %v2075
        %v2077 = vmul.f32 %v1930, 1.442695
        %v2078 = vpow.pop %v2077
        %v2079 = vmul.f32 %v1931, 1.442695
        %v2080 = vpow.pop %v2079
        %v2081 = vmul.f32 %v1932, 1.442695
        %v2082 = vpow.pop %v2081
        %v2083 = vmul.f32 %v1933, 1.442695
        %v2084 = vpow.pop %v2083
        %v2085 = vmul.f32 %v1934, 1.442695
        %v2086 = vpow.pop %v2085
        %v2087 = vmul.f32 %v1935, 1.442695
        %v2088 = vpow.pop %v2087
        %v2089 = vmul.f32 %v1936, 1.442695
        %v2090 = vpow.pop %v2089
        %v2091 = vmul.f32 %v1937, 1.442695
        %v2092 = vpow.pop %v2091
        %v2093 = vmul.f32 %v1938, 1.442695
        %v2094 = vpow.pop %v2093
        %v2095 = vmul.f32 %v1939, 1.442695
        %v2096 = vpow.pop %v2095
        %v2097 = vmul.f32 %v1940, 1.442695
        %v2098 = vpow.pop %v2097
        %v2099 = vmul.f32 %v1941, 1.442695
        %v2100 = vpow.pop %v2099
        %v2101 = vmul.f32 %v1942, 1.442695
        %v2102 = vpow.pop %v2101
        %v2103 = vmul.f32 %v1943, 1.442695
        %v2104 = vpow.pop %v2103
        %v2105 = vmul.f32 %v1944, 1.442695
        %v2106 = vpow.pop %v2105
        %v2107 = vmul.f32 %v1945, 1.442695
        %v2108 = vpow.pop %v2107
        %v2109 = vmul.f32 %v1946, 1.442695
        %v2110 = vpow.pop %v2109
        %v2111 = vmul.f32 %v1947, 1.442695
        %v2112 = vpow.pop %v2111
        %v2113 = vmul.f32 %v1948, 1.442695
        %v2114 = vpow.pop %v2113
        %v2115 = vmul.f32 %v1949, 1.442695
        %v2116 = vpow.pop %v2115
        %v2117 = vmul.f32 %v1950, 1.442695
        %v2118 = vpow.pop %v2117
        %v2119 = vmul.f32 %v1951, 1.442695
        %v2120 = vpow.pop %v2119
        %v2121 = vmul.f32 %v1952, 1.442695
        %v2122 = vpow.pop %v2121
        %v2123 = vmul.f32 %v1953, 1.442695
        %v2124 = vpow.pop %v2123
        %v2125 = vmul.f32 %v1954, 1.442695
        %v2126 = vpow.pop %v2125
        %v2127 = vmul.f32 %v1955, 1.442695
        %v2128 = vpow.pop %v2127
        %v2129 = vmul.f32 %v1956, 1.442695
        %v2130 = vpow.pop %v2129
        %v2131 = vmul.f32 %v1957, 1.442695
        %v2132 = vpow.pop %v2131
        %v2133 = vmul.f32 %v1958, 1.442695
        %v2134 = vpow.pop %v2133
        %v2135 = vmul.f32 %v1959, 1.442695
        %v2136 = vpow.pop %v2135
        %v2137 = vmul.f32 %v1960, 1.442695
        %v2138 = vpow.pop %v2137
        %v2139 = vmul.f32 %v1961, 1.442695
        %v2140 = vpow.pop %v2139
        %v2141 = vmul.f32 %v1962, 1.442695
        %v2142 = vpow.pop %v2141
        %v2143 = vmul.f32 %v1963, 1.442695
        %v2144 = vpow.pop %v2143
        %v2145 = vmul.f32 %v1964, 1.442695
        %v2146 = vpow.pop %v2145
        %v2147 = vmul.f32 %v1965, 1.442695
        %v2148 = vpow.pop %v2147
        %v2149 = vmul.f32 %v1966, 1.442695
        %v2150 = vpow.pop %v2149
        %v2151 = vmul.f32 %v1967, 1.442695
        %v2152 = vpow.pop %v2151
        %v2153 = vmul.f32 %v1968, 1.442695
        %v2154 = vpow.pop %v2153
        %v2155 = vmul.f32 %v1969, 1.442695
        %v2156 = vpow.pop %v2155
        %v2157 = vmul.f32 %v1970, 1.442695
        %v2158 = vpow.pop %v2157
        %v2159 = vmul.f32 %v1971, 1.442695
        %v2160 = vpow.pop %v2159
        %v2161 = vmul.f32 %v1972, 1.442695
        %v2162 = vpow.pop %v2161
        %v2163 = vmul.f32 %v1973, 1.442695
        %v2164 = vpow.pop %v2163
        %v2165 = vmul.f32 %v1974, 1.442695
        %v2166 = vpow.pop %v2165
        %v2167 = vmul.f32 %v1975, 1.442695
        %v2168 = vpow.pop %v2167
        %v2169 = vmul.f32 %v1976, 1.442695
        %v2170 = vpow.pop %v2169
        %v2171 = vmul.f32 %v1977, 1.442695
        %v2172 = vpow.pop %v2171
        %v2173 = vmul.f32 %v1978, 1.442695
        %v2174 = vpow.pop %v2173
        %v2175 = vmul.f32 %v1979, 1.442695
        %v2176 = vpow.pop %v2175
        %v2177 = vmul.f32 %v1980, 1.442695
        %v2178 = vpow.pop %v2177
        %v2179 = vmul.f32 %v1981, 1.442695
        %v2180 = vpow.pop %v2179
        %v2181 = vmul.f32 %v1982, 1.442695
        %v2182 = vpow.pop %v2181
        %v2183 = vmul.f32 %v1983, 1.442695
        %v2184 = vpow.pop %v2183
        %v2185 = vmul.f32 %v1984, 1.442695
        %v2186 = vpow.pop %v2185
        %v2187 = vmul.f32 %v1985, 1.442695
        %v2188 = vpow.pop %v2187
        %v2189 = vmul.f32 %v1986, 1.442695
        %v2190 = vpow.pop %v2189
        %v2191 = vmul.f32 %v1987, 1.442695
        %v2192 = vpow.pop %v2191
        %v2193 = vmul.f32 %v1988, 1.442695
        %v2194 = vpow.pop %v2193
        %v2195 = vmul.f32 %v1989, 1.442695
        %v2196 = vpow.pop %v2195
        %v2197 = vmul.f32 %v1990, 1.442695
        %v2198 = vpow.pop %v2197
        %v2199 = vmul.f32 %v1991, 1.442695
        %v2200 = vpow.pop %v2199
        %v2201 = vmul.f32 %v1992, 1.442695
        %v2202 = vpow.pop %v2201
        %v2203 = vmul.f32 %v1993, 1.442695
        %v2204 = vpow.pop %v2203
        %v2205 = vmul.f32 %v1994, 1.442695
        %v2206 = vpow.pop %v2205
        %v2207 = vmul.f32 %v1995, 1.442695
        %v2208 = vpow.pop %v2207
        %v2209 = vmul.f32 %v1996, 1.442695
        %v2210 = vpow.pop %v2209
        %v2211 = vmul.f32 %v1997, 1.442695
        %v2212 = vpow.pop %v2211
        %v2213 = vmul.f32 %v1998, 1.442695
        %v2214 = vpow.pop %v2213
        %v2215 = vmul.f32 %v1999, 1.442695
        %v2216 = vpow.pop %v2215
        %v2217 = vmul.f32 %v2000, 1.442695
        %v2218 = vpow.pop %v2217
        %v2219 = vmul.f32 %v2001, 1.442695
        %v2220 = vpow.pop %v2219
        %v2221 = vmul.f32 %v2002, 1.442695
        %v2222 = vpow.pop %v2221
        %v2223 = vmul.f32 %v2003, 1.442695
        %v2224 = vpow.pop %v2223
        %v2225 = vmul.f32 %v2004, 1.442695
        %v2226 = vpow.pop %v2225
        %v2227 = vmul.f32 %v2005, 1.442695
        %v2228 = vpow.pop %v2227
        %v2229 = vmul.f32 %v2006, 1.442695
        %v2230 = vpow.pop %v2229
        %v2231 = vmul.f32 %v2007, 1.442695
        %v2232 = vpow.pop %v2231
        %v2233 = vmul.f32 %v2008, 1.442695
        %v2234 = vpow.pop %v2233
        %v2235 = vmul.f32 %v2009, 1.442695
        %v2236 = vpow.pop %v2235
        %v2237 = vmul.f32 %v2010, 1.442695
        %v2238 = vpow.pop %v2237
        %v2239 = vmul.f32 %v2011, 1.442695
        %v2240 = vpow.pop %v2239
        %v2241 = vmul.f32 %v2012, 1.442695
        %v2242 = vpow.pop %v2241
        %v2243 = vmul.f32 %v2013, 1.442695
        %v2244 = vpow.pop %v2243
        %v2245 = vmul.f32 %v2014, 1.442695
        %v2246 = vpow.pop %v2245
        %v2247 = vmul.f32 %v2015, 1.442695
        %v2248 = vpow.pop %v2247
        %v2249 = vmul.f32 %v2016, 1.442695
        %v2250 = vpow.pop %v2249
        %v2251 = vmul.f32 %v2017, 1.442695
        %v2252 = vpow.pop %v2251
        %v2253 = vmul.f32 %v2018, 1.442695
        %v2254 = vpow.pop %v2253
        %v2255 = vmul.f32 %v2019, 1.442695
        %v2256 = vpow.pop %v2255
        %v2257 = vmul.f32 %v2020, 1.442695
        %v2258 = vpow.pop %v2257
        %v2259 = vmul.f32 %v2021, 1.442695
        %v2260 = vpow.pop %v2259
        %v2261 = vmul.f32 %v2022, 1.442695
        %v2262 = vpow.pop %v2261
        %v2263 = vmul.f32 %v2023, 1.442695
        %v2264 = vpow.pop %v2263
        %v2265 = vmul.f32 %v2024, 1.442695
        %v2266 = vpow.pop %v2265
        %v2267 = vmul.f32 %v2025, 1.442695
        %v2268 = vpow.pop %v2267
        %v2269 = vmul.f32 %v2026, 1.442695
        %v2270 = vpow.pop %v2269
        %v2271 = vmul.f32 %v2027, 1.442695
        %v2272 = vpow.pop %v2271
        %v2273 = vmul.f32 %v2028, 1.442695
        %v2274 = vpow.pop %v2273
        %v2275 = vmul.f32 %v2029, 1.442695
        %v2276 = vpow.pop %v2275
        %v2277 = vmul.f32 %v2030, 1.442695
        %v2278 = vpow.pop %v2277
        %v2279 = vmul.f32 %v2031, 1.442695
        %v2280 = vpow.pop %v2279
        %v2281 = vmul.f32 %v2032, 1.442695
        %v2282 = vpow.pop %v2281
        %v2283 = vmul.f32 %v2033, 1.442695
        %v2284 = vpow.pop %v2283
        %v2285 = vmul.f32 %v2034, 1.442695
        %v2286 = vpow.pop %v2285
        %v2287 = vmul.f32 %v2035, 1.442695
        %v2288 = vpow.pop %v2287
        %v2289 = vmul.f32 %v2036, 1.442695
        %v2290 = vpow.pop %v2289
        %v2291 = vmul.f32 %v2037, 1.442695
        %v2292 = vpow.pop %v2291
        %v2293 = vmul.f32 %v2038, 1.442695
        %v2294 = vpow.pop %v2293
        %v2295 = vpack.c.bf16 %v2044, %v2040
        %v2296 = vpack.c.bf16 %v2046, %v2042
        %v2297 = vpack.c.bf16 %v2052, %v2048
        %v2298 = vpack.c.bf16 %v2054, %v2050
        %v2299 = vpack.c.bf16 %v2060, %v2056
        %v2300 = vpack.c.bf16 %v2062, %v2058
        %v2301 = vpack.c.bf16 %v2068, %v2064
        %v2302 = vpack.c.bf16 %v2070, %v2066
        %v2303 = vpack.c.bf16 %v2076, %v2072
        %v2304 = vpack.c.bf16 %v2078, %v2074
        %v2305 = vpack.c.bf16 %v2084, %v2080
        %v2306 = vpack.c.bf16 %v2086, %v2082
        %v2307 = vpack.c.bf16 %v2092, %v2088
        %v2308 = vpack.c.bf16 %v2094, %v2090
        %v2309 = vpack.c.bf16 %v2100, %v2096
        %v2310 = vpack.c.bf16 %v2102, %v2098
        %v2311 = vpack.c.bf16 %v2108, %v2104
        %v2312 = vpack.c.bf16 %v2110, %v2106
        %v2313 = vpack.c.bf16 %v2116, %v2112
        %v2314 = vpack.c.bf16 %v2118, %v2114
        %v2315 = vpack.c.bf16 %v2124, %v2120
        %v2316 = vpack.c.bf16 %v2126, %v2122
        %v2317 = vpack.c.bf16 %v2132, %v2128
        %v2318 = vpack.c.bf16 %v2134, %v2130
        %v2319 = vpack.c.bf16 %v2140, %v2136
        %v2320 = vpack.c.bf16 %v2142, %v2138
        %v2321 = vpack.c.bf16 %v2148, %v2144
        %v2322 = vpack.c.bf16 %v2150, %v2146
        %v2323 = vpack.c.bf16 %v2156, %v2152
        %v2324 = vpack.c.bf16 %v2158, %v2154
        %v2325 = vpack.c.bf16 %v2164, %v2160
        %v2326 = vpack.c.bf16 %v2166, %v2162
        %v2327 = vpack.c.bf16 %v2172, %v2168
        %v2328 = vpack.c.bf16 %v2174, %v2170
        %v2329 = vpack.c.bf16 %v2180, %v2176
        %v2330 = vpack.c.bf16 %v2182, %v2178
        %v2331 = vpack.c.bf16 %v2188, %v2184
        %v2332 = vpack.c.bf16 %v2190, %v2186
        %v2333 = vpack.c.bf16 %v2196, %v2192
        %v2334 = vpack.c.bf16 %v2198, %v2194
        %v2335 = vpack.c.bf16 %v2204, %v2200
        %v2336 = vpack.c.bf16 %v2206, %v2202
        %v2337 = vpack.c.bf16 %v2212, %v2208
        %v2338 = vpack.c.bf16 %v2214, %v2210
        %v2339 = vpack.c.bf16 %v2220, %v2216
        %v2340 = vpack.c.bf16 %v2222, %v2218
        %v2341 = vpack.c.bf16 %v2228, %v2224
        %v2342 = vpack.c.bf16 %v2230, %v2226
        %v2343 = vpack.c.bf16 %v2236, %v2232
        %v2344 = vpack.c.bf16 %v2238, %v2234
        %v2345 = vpack.c.bf16 %v2244, %v2240
        %v2346 = vpack.c.bf16 %v2246, %v2242
        %v2347 = vpack.c.bf16 %v2252, %v2248
        %v2348 = vpack.c.bf16 %v2254, %v2250
        %v2349 = vpack.c.bf16 %v2260, %v2256
        %v2350 = vpack.c.bf16 %v2262, %v2258
        %v2351 = vpack.c.bf16 %v2268, %v2264
        %v2352 = vpack.c.bf16 %v2270, %v2266
        %v2353 = vpack.c.bf16 %v2276, %v2272
        %v2354 = vpack.c.bf16 %v2278, %v2274
        %v2355 = vpack.c.bf16 %v2284, %v2280
        %v2356 = vpack.c.bf16 %v2286, %v2282
        %v2357 = vpack.c.bf16 %v2292, %v2288
        %v2358 = vpack.c.bf16 %v2294, %v2290
        %2359 = vmatprep.subr.bf16.mxu0 %v2310
        %2360 = vmatpush1.bf16.xpose.msra.mxu0 %v2309
        %2361 = vmatprep.subr.bf16.mxu0 %v2308
        %2362 = vmatpush1.bf16.xpose.msra.mxu0 %v2307
        %2363 = vmatprep.subr.bf16.mxu0 %v2306
        %2364 = vmatpush1.bf16.xpose.msra.mxu0 %v2305
        %2365 = vmatprep.subr.bf16.mxu0 %v2304
        %2366 = vmatpush1.bf16.xpose.msra.mxu0 %v2303
        %2367 = vmatprep.subr.bf16.mxu0 %v2302
        %2368 = vmatpush1.bf16.xpose.msra.mxu0 %v2301
        %2369 = vmatprep.subr.bf16.mxu0 %v2300
        %2370 = vmatpush1.bf16.xpose.msra.mxu0 %v2299
        %2371 = vmatprep.subr.bf16.mxu0 %v2298
        %2372 = vmatpush1.bf16.xpose.msra.mxu0 %v2297
        %2373 = vmatprep.subr.bf16.mxu0 %v2296
        %2374 = vmatpush1.bf16.xpose.msra.mxu0 %v2295
        %2375 = vmatprep.subr.bf16.mxu0 %v2326
        %2376 = vmatpush2.bf16.xpose.msra.mxu0 %v2325
        %2377 = vmatprep.subr.bf16.mxu0 %v2324
        %2378 = vmatpush2.bf16.xpose.msra.mxu0 %v2323
        %2379 = vmatprep.subr.bf16.mxu0 %v2322
        %2380 = vmatpush2.bf16.xpose.msra.mxu0 %v2321
        %2381 = vmatprep.subr.bf16.mxu0 %v2320
        %2382 = vmatpush2.bf16.xpose.msra.mxu0 %v2319
        %2383 = vmatprep.subr.bf16.mxu0 %v2318
        %2384 = vmatpush2.bf16.xpose.msra.mxu0 %v2317
        %2385 = vmatprep.subr.bf16.mxu0 %v2316
        %2386 = vmatpush2.bf16.xpose.msra.mxu0 %v2315
        %2387 = vmatprep.subr.bf16.mxu0 %v2314
        %2388 = vmatpush2.bf16.xpose.msra.mxu0 %v2313
        %2389 = vmatprep.subr.bf16.mxu0 %v2312
        %2390 = vmatpush2.bf16.xpose.msra.mxu0 %v2311
        %2391 = vmatprep.mubr.bf16.mxu0 1065369472
        %2392 = vmatmul.mubr.bf16.gmra.mxu0 1065369472
        %v2393 = vpop.f32.mrf.mxu0
        %v2394 = vadd.f32 0.0, %v2393
        %v2395 = vpop.f32.mrf.mxu0
        %v2396 = vadd.f32 0.0, %v2395
        %v2397 = vpop.f32.mrf.mxu0
        %v2398 = vpop.f32.mrf.mxu0
        %2399 = vdwg.mxu0
        %2400 = vmatprep.subr.bf16.mxu0 %v2342
        %2401 = vmatpush1.bf16.xpose.msra.mxu0 %v2341
        %2402 = vmatprep.subr.bf16.mxu0 %v2340
        %2403 = vmatpush1.bf16.xpose.msra.mxu0 %v2339
        %2404 = vmatprep.subr.bf16.mxu0 %v2338
        %2405 = vmatpush1.bf16.xpose.msra.mxu0 %v2337
        %2406 = vmatprep.subr.bf16.mxu0 %v2336
        %2407 = vmatpush1.bf16.xpose.msra.mxu0 %v2335
        %2408 = vmatprep.subr.bf16.mxu0 %v2334
        %2409 = vmatpush1.bf16.xpose.msra.mxu0 %v2333
        %2410 = vmatprep.subr.bf16.mxu0 %v2332
        %2411 = vmatpush1.bf16.xpose.msra.mxu0 %v2331
        %2412 = vmatprep.subr.bf16.mxu0 %v2330
        %2413 = vmatpush1.bf16.xpose.msra.mxu0 %v2329
        %2414 = vmatprep.subr.bf16.mxu0 %v2328
        %2415 = vmatpush1.bf16.xpose.msra.mxu0 %v2327
        %2416 = vmatprep.subr.bf16.mxu0 %v2358
        %2417 = vmatpush2.bf16.xpose.msra.mxu0 %v2357
        %2418 = vmatprep.subr.bf16.mxu0 %v2356
        %2419 = vmatpush2.bf16.xpose.msra.mxu0 %v2355
        %2420 = vmatprep.subr.bf16.mxu0 %v2354
        %2421 = vmatpush2.bf16.xpose.msra.mxu0 %v2353
        %2422 = vmatprep.subr.bf16.mxu0 %v2352
        %2423 = vmatpush2.bf16.xpose.msra.mxu0 %v2351
        %2424 = vmatprep.subr.bf16.mxu0 %v2350
        %2425 = vmatpush2.bf16.xpose.msra.mxu0 %v2349
        %2426 = vmatprep.subr.bf16.mxu0 %v2348
        %2427 = vmatpush2.bf16.xpose.msra.mxu0 %v2347
        %2428 = vmatprep.subr.bf16.mxu0 %v2346
        %2429 = vmatpush2.bf16.xpose.msra.mxu0 %v2345
        %2430 = vmatprep.subr.bf16.mxu0 %v2344
        %2431 = vmatpush2.bf16.xpose.msra.mxu0 %v2343
        %2432 = vmatprep.mubr.bf16.mxu0 1065369472
        %2433 = vmatmul.mubr.bf16.gmra.mxu0 1065369472
        %v2434 = vpop.f32.mrf.mxu0
        %v2435 = vadd.f32 0.0, %v2434
        %v2436 = vpop.f32.mrf.mxu0
        %v2437 = vadd.f32 0.0, %v2436
        %v2438 = vpop.f32.mrf.mxu0
        %v2439 = vpop.f32.mrf.mxu0
        %2440 = vdwg.mxu0
        %2441 = vmatprep.subr.bf16.mxu0 %v2310
        %2442 = vmatpush1.bf16.xpose.msra.mxu0 %v2309
        %2443 = vmatprep.subr.bf16.mxu0 %v2308
        %2444 = vmatpush1.bf16.xpose.msra.mxu0 %v2307
        %2445 = vmatprep.subr.bf16.mxu0 %v2306
        %2446 = vmatpush1.bf16.xpose.msra.mxu0 %v2305
        %2447 = vmatprep.subr.bf16.mxu0 %v2304
        %2448 = vmatpush1.bf16.xpose.msra.mxu0 %v2303
        %2449 = vmatprep.subr.bf16.mxu0 %v2302
        %2450 = vmatpush1.bf16.xpose.msra.mxu0 %v2301
        %2451 = vmatprep.subr.bf16.mxu0 %v2300
        %2452 = vmatpush1.bf16.xpose.msra.mxu0 %v2299
        %2453 = vmatprep.subr.bf16.mxu0 %v2298
        %2454 = vmatpush1.bf16.xpose.msra.mxu0 %v2297
        %2455 = vmatprep.subr.bf16.mxu0 %v2296
        %2456 = vmatpush1.bf16.xpose.msra.mxu0 %v2295
        %2457 = vmatprep.subr.bf16.mxu0 %v2326
        %2458 = vmatpush2.bf16.xpose.msra.mxu0 %v2325
        %2459 = vmatprep.subr.bf16.mxu0 %v2324
        %2460 = vmatpush2.bf16.xpose.msra.mxu0 %v2323
        %2461 = vmatprep.subr.bf16.mxu0 %v2322
        %2462 = vmatpush2.bf16.xpose.msra.mxu0 %v2321
        %2463 = vmatprep.subr.bf16.mxu0 %v2320
        %2464 = vmatpush2.bf16.xpose.msra.mxu0 %v2319
        %2465 = vmatprep.subr.bf16.mxu0 %v2318
        %2466 = vmatpush2.bf16.xpose.msra.mxu0 %v2317
        %2467 = vmatprep.subr.bf16.mxu0 %v2316
        %2468 = vmatpush2.bf16.xpose.msra.mxu0 %v2315
        %2469 = vmatprep.subr.bf16.mxu0 %v2314
        %2470 = vmatpush2.bf16.xpose.msra.mxu0 %v2313
        %2471 = vmatprep.subr.bf16.mxu0 %v2312
        %2472 = vmatpush2.bf16.xpose.msra.mxu0 %v2311
        %2473 = vmatprep.mubr.bf16.mxu0 %v1166
        %2474 = vmatmul.mubr.bf16.gmra.mxu0 %v1165
        %v2475 = vpop.f32.mrf.mxu0
        %v2476 = vadd.f32 0.0, %v2475
        %v2477 = vpop.f32.mrf.mxu0
        %v2478 = vadd.f32 0.0, %v2477
        %v2479 = vpop.f32.mrf.mxu0
        %v2480 = vadd.f32 0.0, %v2479
        %v2481 = vpop.f32.mrf.mxu0
        %v2482 = vadd.f32 0.0, %v2481
        %2483 = vmatprep.mubr.bf16.mxu0 %v1168
        %2484 = vmatmul.mubr.bf16.gmra.mxu0 %v1167
        %v2485 = vpop.f32.mrf.mxu0
        %v2486 = vadd.f32 0.0, %v2485
        %v2487 = vpop.f32.mrf.mxu0
        %v2488 = vadd.f32 0.0, %v2487
        %v2489 = vpop.f32.mrf.mxu0
        %v2490 = vadd.f32 0.0, %v2489
        %v2491 = vpop.f32.mrf.mxu0
        %v2492 = vadd.f32 0.0, %v2491
        %2493 = vdwg.mxu0
        %2494 = vmatprep.subr.bf16.mxu0 %v2342
        %2495 = vmatpush1.bf16.xpose.msra.mxu0 %v2341
        %2496 = vmatprep.subr.bf16.mxu0 %v2340
        %2497 = vmatpush1.bf16.xpose.msra.mxu0 %v2339
        %2498 = vmatprep.subr.bf16.mxu0 %v2338
        %2499 = vmatpush1.bf16.xpose.msra.mxu0 %v2337
        %2500 = vmatprep.subr.bf16.mxu0 %v2336
        %2501 = vmatpush1.bf16.xpose.msra.mxu0 %v2335
        %2502 = vmatprep.subr.bf16.mxu0 %v2334
        %2503 = vmatpush1.bf16.xpose.msra.mxu0 %v2333
        %2504 = vmatprep.subr.bf16.mxu0 %v2332
        %2505 = vmatpush1.bf16.xpose.msra.mxu0 %v2331
        %2506 = vmatprep.subr.bf16.mxu0 %v2330
        %2507 = vmatpush1.bf16.xpose.msra.mxu0 %v2329
        %2508 = vmatprep.subr.bf16.mxu0 %v2328
        %2509 = vmatpush1.bf16.xpose.msra.mxu0 %v2327
        %2510 = vmatprep.subr.bf16.mxu0 %v2358
        %2511 = vmatpush2.bf16.xpose.msra.mxu0 %v2357
        %2512 = vmatprep.subr.bf16.mxu0 %v2356
        %2513 = vmatpush2.bf16.xpose.msra.mxu0 %v2355
        %2514 = vmatprep.subr.bf16.mxu0 %v2354
        %2515 = vmatpush2.bf16.xpose.msra.mxu0 %v2353
        %2516 = vmatprep.subr.bf16.mxu0 %v2352
        %2517 = vmatpush2.bf16.xpose.msra.mxu0 %v2351
        %2518 = vmatprep.subr.bf16.mxu0 %v2350
        %2519 = vmatpush2.bf16.xpose.msra.mxu0 %v2349
        %2520 = vmatprep.subr.bf16.mxu0 %v2348
        %2521 = vmatpush2.bf16.xpose.msra.mxu0 %v2347
        %2522 = vmatprep.subr.bf16.mxu0 %v2346
        %2523 = vmatpush2.bf16.xpose.msra.mxu0 %v2345
        %2524 = vmatprep.subr.bf16.mxu0 %v2344
        %2525 = vmatpush2.bf16.xpose.msra.mxu0 %v2343
        %2526 = vmatprep.mubr.bf16.mxu0 %v1170
        %2527 = vmatmul.mubr.bf16.gmra.mxu0 %v1169
        %v2528 = vpop.f32.mrf.mxu0
        %v2529 = vadd.f32 0.0, %v2528
        %v2530 = vpop.f32.mrf.mxu0
        %v2531 = vadd.f32 0.0, %v2530
        %v2532 = vpop.f32.mrf.mxu0
        %v2533 = vadd.f32 0.0, %v2532
        %v2534 = vpop.f32.mrf.mxu0
        %v2535 = vadd.f32 0.0, %v2534
        %2536 = vmatprep.mubr.bf16.mxu0 %v1172
        %2537 = vmatmul.mubr.bf16.gmra.mxu0 %v1171
        %v2538 = vpop.f32.mrf.mxu0
        %v2539 = vadd.f32 0.0, %v2538
        %v2540 = vpop.f32.mrf.mxu0
        %v2541 = vadd.f32 0.0, %v2540
        %v2542 = vpop.f32.mrf.mxu0
        %v2543 = vadd.f32 0.0, %v2542
        %v2544 = vpop.f32.mrf.mxu0
        %v2545 = vadd.f32 0.0, %v2544
        %2546 = vdwg.mxu0
        %v2547 = vrcp.pop %v2394
        %v2548 = vrcp.pop %v2396
        %v2549 = vrcp.pop %v2435
        %v2550 = vrcp.pop %v2437
        %v2551 = vlaneseq
        %v2552 = vshrl.u32 %v2551, 7
        %v2553 = vsub.s32 0, %v2552
        %v2554 = vrot.slane %v2547, %v2553
        %v2555 = vlaneseq
        %v2556 = vshrl.u32 %v2555, 7
        %v2557 = vsub.s32 0, %v2556
        %v2558 = vrot.slane %v2548, %v2557
        %v2559 = vlaneseq
        %v2560 = vshrl.u32 %v2559, 7
        %v2561 = vsub.s32 0, %v2560
        %v2562 = vrot.slane %v2549, %v2561
        %v2563 = vlaneseq
        %v2564 = vshrl.u32 %v2563, 7
        %v2565 = vsub.s32 0, %v2564
        %v2566 = vrot.slane %v2550, %v2565
        %v2567 = vmul.f32 %v2476, %v2554
        %v2568 = vmul.f32 %v2478, %v2558
        %v2569 = vmul.f32 %v2480, %v2554
        %v2570 = vmul.f32 %v2482, %v2558
        %v2571 = vmul.f32 %v2486, %v2554
        %v2572 = vmul.f32 %v2488, %v2558
        %v2573 = vmul.f32 %v2490, %v2554
        %v2574 = vmul.f32 %v2492, %v2558
        %v2575 = vmul.f32 %v2529, %v2562
        %v2576 = vmul.f32 %v2531, %v2566
        %v2577 = vmul.f32 %v2533, %v2562
        %v2578 = vmul.f32 %v2535, %v2566
        %v2579 = vmul.f32 %v2539, %v2562
        %v2580 = vmul.f32 %v2541, %v2566
        %v2581 = vmul.f32 %v2543, %v2562
        %v2582 = vmul.f32 %v2545, %v2566
        %v2583 = vpack.c.bf16 %v2569, %v2567
        %v2584 = vpack.c.bf16 %v2570, %v2568
        %v2585 = vpack.c.bf16 %v2573, %v2571
        %v2586 = vpack.c.bf16 %v2574, %v2572
        %v2587 = vpack.c.bf16 %v2577, %v2575
        %v2588 = vpack.c.bf16 %v2578, %v2576
        %v2589 = vpack.c.bf16 %v2581, %v2579
        %v2590 = vpack.c.bf16 %v2582, %v2580
        %v2591 = vld [vmem:[%s4] sm:$0xf]
        %v2592 = vld [vmem:[%s4 + $0x4] sm:$0xf]
        %v2593 = vld [vmem:[%s4 + $0x8] sm:$0xf]
        %v2594 = vld [vmem:[%s4 + $0xc] sm:$0xf]
        %v2595 = vld [vmem:[%s4 + $0x10] sm:$0xf]
        %v2596 = vld [vmem:[%s4 + $0x14] sm:$0xf]
        %v2597 = vld [vmem:[%s4 + $0x18] sm:$0xf]
        %v2598 = vld [vmem:[%s4 + $0x1c] sm:$0xf]
        %v2599 = vld [vmem:[%s5] sm:$0xff]
        %v2600 = vld [vmem:[%s5 + $0x8] sm:$0xff]
        %v2601 = vld [vmem:[%s5 + $0x10] sm:$0xff]
        %v2602 = vld [vmem:[%s5 + $0x18] sm:$0xff]
        %v2603 = vld [vmem:[%s5 + $0x20] sm:$0xff]
        %v2604 = vld [vmem:[%s5 + $0x28] sm:$0xff]
        %v2605 = vld [vmem:[%s5 + $0x30] sm:$0xff]
        %v2606 = vld [vmem:[%s5 + $0x38] sm:$0xff]
        %2608 = vset.pattern.permute.xlu0 0
        %2609 = vperm.xlu0 %2608, %v2599
        %v2610 = vpop.permute.xlu0 %2609
        %2613 = vset.pattern.permute.xlu0 0
        %2614 = vperm.xlu0 %2613, %v2600
        %v2615 = vpop.permute.xlu0 %2614
        %2618 = vset.pattern.permute.xlu0 0
        %2619 = vperm.xlu0 %2618, %v2601
        %v2620 = vpop.permute.xlu0 %2619
        %2623 = vset.pattern.permute.xlu0 0
        %2624 = vperm.xlu0 %2623, %v2602
        %v2625 = vpop.permute.xlu0 %2624
        %2628 = vset.pattern.permute.xlu0 0
        %2629 = vperm.xlu0 %2628, %v2603
        %v2630 = vpop.permute.xlu0 %2629
        %2633 = vset.pattern.permute.xlu0 0
        %2634 = vperm.xlu0 %2633, %v2604
        %v2635 = vpop.permute.xlu0 %2634
        %2638 = vset.pattern.permute.xlu0 0
        %2639 = vperm.xlu0 %2638, %v2605
        %v2640 = vpop.permute.xlu0 %2639
        %2643 = vset.pattern.permute.xlu0 0
        %2644 = vperm.xlu0 %2643, %v2606
        %v2645 = vpop.permute.xlu0 %2644
        %v2655 = vunpack.c.l.b16 %v2591
        %v2656 = vunpack.c.l.b16 %v2592
        %v2657 = vunpack.c.l.b16 %v2593
        %v2658 = vunpack.c.l.b16 %v2594
        %v2659 = vunpack.c.l.b16 %v2595
        %v2660 = vunpack.c.l.b16 %v2596
        %v2661 = vunpack.c.l.b16 %v2597
        %v2662 = vunpack.c.l.b16 %v2598
        %v2663 = vpack.c.b16 %v2656, %v2655
        %v2664 = vpack.c.b16 %v2658, %v2657
        %v2665 = vpack.c.b16 %v2660, %v2659
        %v2666 = vpack.c.b16 %v2662, %v2661
        %v2668 = vsel %vm380, %v2663, 0
        %v2671 = vsel %vm380, %v2664, 0
        %v2674 = vsel %vm380, %v2665, 0
        %v2677 = vsel %vm380, %v2666, 0
        %2679 = vmatprep.subr.bf16.mxu0 0
        %2680 = vmatpush1.bf16.msra.mxu0 0
        %2681 = vmatprep.subr.bf16.mxu0 0
        %2682 = vmatpush1.bf16.msra.mxu0 0
        %2683 = vmatprep.subr.bf16.mxu0 0
        %2684 = vmatpush1.bf16.msra.mxu0 0
        %2685 = vmatprep.subr.bf16.mxu0 0
        %2686 = vmatpush1.bf16.msra.mxu0 0
        %2687 = vmatprep.subr.bf16.mxu0 %v2590
        %2688 = vmatpush1.bf16.msra.mxu0 %v2589
        %2689 = vmatprep.subr.bf16.mxu0 %v2588
        %2690 = vmatpush1.bf16.msra.mxu0 %v2587
        %2691 = vmatprep.subr.bf16.mxu0 %v2586
        %2692 = vmatpush1.bf16.msra.mxu0 %v2585
        %2693 = vmatprep.subr.bf16.mxu0 %v2584
        %2694 = vmatpush1.bf16.msra.mxu0 %v2583
        %2695 = vmatprep.subr.bf16.mxu0 0
        %2696 = vmatpush2.bf16.msra.mxu0 0
        %2697 = vmatprep.subr.bf16.mxu0 0
        %2698 = vmatpush2.bf16.msra.mxu0 0
        %2699 = vmatprep.subr.bf16.mxu0 0
        %2700 = vmatpush2.bf16.msra.mxu0 0
        %2701 = vmatprep.subr.bf16.mxu0 0
        %2702 = vmatpush2.bf16.msra.mxu0 0
        %2703 = vmatprep.subr.bf16.mxu0 0
        %2704 = vmatpush2.bf16.msra.mxu0 0
        %2705 = vmatprep.subr.bf16.mxu0 0
        %2706 = vmatpush2.bf16.msra.mxu0 0
        %2707 = vmatprep.subr.bf16.mxu0 0
        %2708 = vmatpush2.bf16.msra.mxu0 0
        %2709 = vmatprep.subr.bf16.mxu0 0
        %2710 = vmatpush2.bf16.msra.mxu0 0
        %2711 = vmatprep.mubr.bf16.mxu0 0
        %2712 = vmatmul.mubr.bf16.gmra.mxu0 %v2668
        %v2713 = vpop.f32.mrf.mxu0
        %v2714 = vadd.f32 %v2610, %v2713
        %v2715 = vpop.f32.mrf.mxu0
        %v2716 = vadd.f32 %v2610, %v2715
        %v2717 = vpop.f32.mrf.mxu0
        %v2718 = vadd.f32 %v2615, %v2717
        %v2719 = vpop.f32.mrf.mxu0
        %v2720 = vadd.f32 %v2615, %v2719
        %2721 = vmatprep.mubr.bf16.mxu0 0
        %2722 = vmatmul.mubr.bf16.gmra.mxu0 %v2671
        %v2723 = vpop.f32.mrf.mxu0
        %v2724 = vadd.f32 %v2620, %v2723
        %v2725 = vpop.f32.mrf.mxu0
        %v2726 = vadd.f32 %v2620, %v2725
        %v2727 = vpop.f32.mrf.mxu0
        %v2728 = vadd.f32 %v2625, %v2727
        %v2729 = vpop.f32.mrf.mxu0
        %v2730 = vadd.f32 %v2625, %v2729
        %2731 = vmatprep.mubr.bf16.mxu0 0
        %2732 = vmatmul.mubr.bf16.gmra.mxu0 %v2674
        %v2733 = vpop.f32.mrf.mxu0
        %v2734 = vadd.f32 %v2630, %v2733
        %v2735 = vpop.f32.mrf.mxu0
        %v2736 = vadd.f32 %v2630, %v2735
        %v2737 = vpop.f32.mrf.mxu0
        %v2738 = vadd.f32 %v2635, %v2737
        %v2739 = vpop.f32.mrf.mxu0
        %v2740 = vadd.f32 %v2635, %v2739
        %2741 = vmatprep.mubr.bf16.mxu0 0
        %2742 = vmatmul.mubr.bf16.gmra.mxu0 %v2677
        %v2743 = vpop.f32.mrf.mxu0
        %v2744 = vadd.f32 %v2640, %v2743
        %v2745 = vpop.f32.mrf.mxu0
        %v2746 = vadd.f32 %v2640, %v2745
        %v2747 = vpop.f32.mrf.mxu0
        %v2748 = vadd.f32 %v2645, %v2747
        %v2749 = vpop.f32.mrf.mxu0
        %v2750 = vadd.f32 %v2645, %v2749
        %2751 = vdwg.mxu0
        %v2752 = vadd.f32 %v2714, %v252
        %v2753 = vadd.f32 %v2716, %v253
        %v2754 = vadd.f32 %v2718, %v254
        %v2755 = vadd.f32 %v2720, %v255
        %v2756 = vadd.f32 %v2724, %v256
        %v2757 = vadd.f32 %v2726, %v257
        %v2758 = vadd.f32 %v2728, %v258
        %v2759 = vadd.f32 %v2730, %v259
        %v2760 = vadd.f32 %v2734, %v260
        %v2761 = vadd.f32 %v2736, %v261
        %v2762 = vadd.f32 %v2738, %v262
        %v2763 = vadd.f32 %v2740, %v263
        %v2764 = vadd.f32 %v2744, %v264
        %v2765 = vadd.f32 %v2746, %v265
        %v2766 = vadd.f32 %v2748, %v266
        %v2767 = vadd.f32 %v2750, %v267
        %2768 = vst [vmem:[%s244] sm:$0xff] %v2752
        %2769 = vst [vmem:[%s244 + $0x8] sm:$0xff] %v2753
        %2770 = vst [vmem:[%s244 + $0x10] sm:$0xff] %v2754
        %2771 = vst [vmem:[%s244 + $0x18] sm:$0xff] %v2755
        %2772 = vst [vmem:[%s244 + $0x20] sm:$0xff] %v2756
        %2773 = vst [vmem:[%s244 + $0x28] sm:$0xff] %v2757
        %2774 = vst [vmem:[%s244 + $0x30] sm:$0xff] %v2758
        %2775 = vst [vmem:[%s244 + $0x38] sm:$0xff] %v2759
        %2776 = vst [vmem:[%s244 + $0x40] sm:$0xff] %v2760
        %2777 = vst [vmem:[%s244 + $0x48] sm:$0xff] %v2761
        %2778 = vst [vmem:[%s244 + $0x50] sm:$0xff] %v2762
        %2779 = vst [vmem:[%s244 + $0x58] sm:$0xff] %v2763
        %2780 = vst [vmem:[%s244 + $0x60] sm:$0xff] %v2764
        %2781 = vst [vmem:[%s244 + $0x68] sm:$0xff] %v2765
        %2782 = vst [vmem:[%s244 + $0x70] sm:$0xff] %v2766
        %2783 = vst [vmem:[%s244 + $0x78] sm:$0xff] %v2767
        %s2784 = sand.u32 %s159, 1
        %s2785 = scalar_lea.sflag [#allocation3], %s2784
        %s2786 = sand.u32 %s159, 1
        %s2787 = smul.addr %s2786, 128
        %s2788 = scalar_lea.vmem [#allocation2], %s2787
        // Predicated region
        $region45: #{tpu_custom_call.1} parent=43 // pred_check
          %p2789 = pneg %p169
        $region46: #{tpu_custom_call.1} parent=43 // pred_check_branch
          %2791 = sbr.rel (%p2789) target = $region48
        $region47: #{tpu_custom_call.1} parent=43 // pred_region
          %s2793 = ssub.s32 2048, 2048
          %2794 = vsyncadd %s2785, %s2793
          %s2795 = smul.addr %s20, 16
          %s2796 = smul.addr %s2795, 128
          %s2797 = scalar_lea.hbm %s6, %s2796
          %s2798 = sshll.u32 %s2788, 4
          %s2799 = int_to_ptr.vmem [resolvable:$true] %s2798
          %2804 = dma.vmem_to_hbm [thread:$0]  %s2799, 2048, %s2797, %s2785, 256, 256, 16
        $region48: #{tpu_custom_call.1} parent=43 // pred_fallthru
          _
      $region44: #{tpu_custom_call.1} parent=5 // pred_fallthru
        _
      %p2805 = scmp.le.s32.totalorder 2, %s15
      // Predicated region
      $region49: #{tpu_custom_call.1} parent=5 // pred_check
        %p2806 = pneg %p2805
      $region50: #{tpu_custom_call.1} parent=5 // pred_check_branch
        %2808 = sbr.rel (%p2806) target = $region52
      $region51: #{tpu_custom_call.1} parent=5 // pred_region
        %s2809 = ssub.s32 %s15, 2
        // Predicated region
        $region53: #{tpu_custom_call.1} parent=51 // pred_check
          %p2810 = pneg %p175
        $region54: #{tpu_custom_call.1} parent=51 // pred_check_branch
          %2812 = sbr.rel (%p2810) target = $region56
        $region55: #{tpu_custom_call.1} parent=51 // pred_region
          %s2813 = sand.u32 %s160, 1
          %s2814 = scalar_lea.sflag [#allocation3], %s2813
          %s2815 = sand.u32 %s160, 1
          %s2816 = smul.addr %s2815, 128
          %s2817 = scalar_lea.vmem [#allocation2], %s2816
          %2818 = dma.done %s2814, 2048
        $region56: #{tpu_custom_call.1} parent=51 // pred_fallthru
          _
      $region52: #{tpu_custom_call.1} parent=5 // pred_fallthru
        _
    $region6: #{tpu_custom_call.1} parent=1 // loop_footer
      %s19 = sadd.s32 1, %s15
    $region7: #{tpu_custom_call.1} parent=1 // loop_footer_branch
      %14 = sbr.rel target = $region3
    $region8: #{tpu_custom_call.1} parent=1 // loop_exit
      _
    %2819 = vsyncpa [#allocation3], 1
    %s2820 = scalar_lea.sflag [#allocation3], 1
    %2821 = vsyncpa %s2820, 1

</llo_original>
